<compile_context>
chip_gen: v7x
topology: tpu7x:2x2x1
jax: 0.10.0
libtpu: 0.0.40
codegen_flags: <defaults>
</compile_context>

<pallas_src>
import numpy as np
import jax
import jax.numpy as jnp
from jax.experimental import pallas as pl
from jax.experimental.pallas import tpu as pltpu

NUM_EMB = 32                      # num_embedding
BLOCK_SIZE = 8                    # block_size (sequence length)
NUM_HEAD = 4                      # Block(num_embd=32, num_head=4)
HEAD_SIZE = NUM_EMB // NUM_HEAD   # 8 (Block overrides the module-level head_size)
FF_HIDDEN = 4 * NUM_EMB           # 128
_MASK_NEG = -1e30                 # additive mask value (exp underflows to exactly 0)


def block_kernel(x_ref, mask_ref, wq_ref, wk_ref, wv_ref, wp_ref, bp_ref,
                 w1_ref, b1_ref, w2_ref, b2_ref, o_ref):
    # x_ref: (BB, T, C) f32.  Weights are pre-laid-out (in, out) per head; scale folded into Q.
    x = x_ref[...]
    BB, T, C = x.shape
    M = BB * T
    NH = wq_ref.shape[0]
    cdt = wq_ref.dtype                      # matmul operand dtype (f32 or bf16)
    approx_recip = (cdt == jnp.bfloat16)    # exact divide in the f32 path

    x2 = x.reshape(M, C)                    # rows = merged (batch, time)
    xc = x2.astype(cdt)
    xb = jnp.broadcast_to(xc[None], (NH, M, C))      # heads = batch dim of every matmul

    # --- per-head Q/K/V projections as batched matmuls (no per-head lane slices) ---
    q = jnp.einsum('hmc,hcd->hmd', xb, wq_ref[...], preferred_element_type=jnp.float32)
    k = jnp.einsum('hmc,hcd->hmd', xb, wk_ref[...], preferred_element_type=jnp.float32)
    v = jnp.einsum('hmc,hcd->hmd', xb, wv_ref[...], preferred_element_type=jnp.float32)

    # --- scores over merged rows; additive mask restores batch separation + causality ---
    s = jnp.einsum('hqd,hkd->hqk', q.astype(cdt), k.astype(cdt),
                   preferred_element_type=jnp.float32)            # (NH, M, M)
    s = s + mask_ref[...][None]                                   # 0 / -1e30 constant
    s = s - jnp.max(s, axis=-1, keepdims=True)                    # one softmax for all heads
    p = jnp.exp(s)
    denom = jnp.sum(p, axis=-1, keepdims=True)
    if approx_recip:
        p = p * pl.reciprocal(denom, approx=True)                 # EUP slot (bf16 path only)
    else:
        p = p / denom                                             # exact (f32 path)

    o = jnp.einsum('hqk,hkd->hqd', p.astype(cdt), v.astype(cdt),
                   preferred_element_type=jnp.float32)            # (NH, M, hs)

    # --- head concat + output projection fused: mha = sum_h o_h @ Wp[h*hs:(h+1)*hs, :] ---
    proj = jnp.einsum('hmd,hdo->hmo', o.astype(cdt), wp_ref[...],
                      preferred_element_type=jnp.float32)         # (NH, M, C)
    mha = jnp.sum(proj, axis=0) + bp_ref[0]                       # (M, C)

    x1 = x2 + mha                                                 # residual 1 (f32)

    # --- FeedForward: Linear(C,4C) -> ReLU -> Linear(4C,C) ---
    h1 = jnp.dot(x1.astype(cdt), w1_ref[...], preferred_element_type=jnp.float32) + b1_ref[0]
    h1 = jnp.maximum(h1, 0.0)
    ff = jnp.dot(h1.astype(cdt), w2_ref[...], preferred_element_type=jnp.float32) + b2_ref[0]

    # NOTE: output last dim C=32 < 128 lanes -> masked stores; not worth repacking at this size.
    o_ref[...] = (x1 + ff).reshape(BB, T, C)                      # residual 2


def _prepare_weights(params, compute_dtype):
    """One-time host-side re-layout to (in, out); 1/sqrt(C) folded into Q weights."""
    wk, wq, wv, wp, bp, w1, b1, w2, b2 = params
    NH, hs, C = wq.shape
    scale = C ** (-0.5)   # PyTorch ref scales by num_embd**-0.5 (not head_size)
    wq3 = (jnp.transpose(wq, (0, 2, 1)) * scale).astype(compute_dtype)   # (NH, C, hs)
    wk3 = jnp.transpose(wk, (0, 2, 1)).astype(compute_dtype)             # (NH, C, hs)
    wv3 = jnp.transpose(wv, (0, 2, 1)).astype(compute_dtype)             # (NH, C, hs)
    wp3 = wp.T.reshape(NH, hs, C).astype(compute_dtype)                  # (NH, hs, C)
    w1t = w1.T.astype(compute_dtype)                                     # (C, 4C)
    w2t = w2.T.astype(compute_dtype)                                     # (4C, C)
    return (wq3, wk3, wv3, wp3, bp.astype(jnp.float32),
            w1t, b1.astype(jnp.float32), w2t, b2.astype(jnp.float32))


def _causal_batch_mask(BB, T):
    """Additive mask over merged (batch, time) rows: 0 where same batch element AND causal."""
    idx = np.arange(BB * T)
    same_b = (idx[:, None] // T) == (idx[None, :] // T)
    causal = (idx[:, None] % T) >= (idx[None, :] % T)
    return jnp.asarray(np.where(same_b & causal, 0.0, _MASK_NEG), dtype=jnp.float32)


def _block_forward_impl(x, wq3, wk3, wv3, wp3, bp, w1t, b1, w2t, b2):
    B, T, C = x.shape
    # Split only when each half still has >=128 rows of M (fills MXU rows / both v7x cores);
    # at small B a single grid step avoids per-step pipeline overhead on every generation.
    # TODO(synk): for very large per-block batch the merged-(batch,time) score matrix wastes
    # O(BB) score FLOPs; grid over batch more finely in that regime.
    num_steps = 2 if (B % 2 == 0 and (B // 2) * T >= 128) else 1
    BB = B // num_steps
    mask = _causal_batch_mask(BB, T)   # numpy at trace time -> baked constant, no per-call ops

    def full_spec(a):
        zeros = (0,) * a.ndim
        return pl.BlockSpec(a.shape, lambda s, _z=zeros: _z)

    return pl.pallas_call(
        block_kernel,
        out_shape=jax.ShapeDtypeStruct((B, T, C), jnp.float32),
        grid=(num_steps,),
        in_specs=[
            pl.BlockSpec((BB, T, C), lambda s: (s, 0, 0)),   # x: BB whole batch elements/step
            full_spec(mask),
            full_spec(wq3), full_spec(wk3), full_spec(wv3), full_spec(wp3), full_spec(bp),
            full_spec(w1t), full_spec(b1), full_spec(w2t), full_spec(b2),
        ],
        out_specs=pl.BlockSpec((BB, T, C), lambda s: (s, 0, 0)),
        compiler_params=pltpu.CompilerParams(
            dimension_semantics=("parallel",) if num_steps > 1 else ("arbitrary",)),
    )(x.astype(jnp.float32), mask, wq3, wk3, wv3, wp3, bp, w1t, b1, w2t, b2)


def make_block_forward(params, compute_dtype=jnp.float32):
    """Prepare weights ONCE (host-side) and return a jitted x -> Block(x) whose per-call
    work is only the pallas_call. compute_dtype=jnp.bfloat16 is an opt-in MXU-operand path
    for v6e/v7x; keep the f32 default on v5e."""
    prepped = _prepare_weights(params, compute_dtype)
    fwd = jax.jit(_block_forward_impl)
    return lambda x: fwd(x, *prepped)


def block_ref(x, params):
    """Pure-JAX reference reproducing the PyTorch forward exactly (f32)."""
    wk, wq, wv, wp, bp, w1, b1, w2, b2 = params
    B, T, C = x.shape
    scale = C ** (-0.5)
    mask = jnp.tril(jnp.ones((T, T), bool))
    heads = []
    for h in range(wk.shape[0]):
        k = x @ wk[h].T
        q = x @ wq[h].T
        v = x @ wv[h].T
        w = (q @ jnp.swapaxes(k, -1, -2)) * scale
        w = jnp.where(mask, w, -jnp.inf)
        w = jax.nn.softmax(w, axis=-1)
        heads.append(w @ v)
    out = jnp.concatenate(heads, axis=-1)
    mha = out @ wp.T + bp[0]
    x1 = x + mha
    h1 = jax.nn.relu(x1 @ w1.T + b1[0])
    ff = h1 @ w2.T + b2[0]
    return x1 + ff


if __name__ == "__main__":
    key = jax.random.PRNGKey(0)
    ks = jax.random.split(key, 10)

    B, T, C = 2, BLOCK_SIZE, NUM_EMB
    x = jax.random.normal(ks[0], (B, T, C), jnp.float32)

    # Deterministic synthetic parameters (PyTorch Linear convention: (out, in) weights).
    s = 0.1
    wk = jax.random.normal(ks[1], (NUM_HEAD, HEAD_SIZE, C), jnp.float32) * s
    wq = jax.random.normal(ks[2], (NUM_HEAD, HEAD_SIZE, C), jnp.float32) * s
    wv = jax.random.normal(ks[3], (NUM_HEAD, HEAD_SIZE, C), jnp.float32) * s
    wp = jax.random.normal(ks[4], (C, C), jnp.float32) * s
    bp = jax.random.normal(ks[5], (1, C), jnp.float32) * s
    w1 = jax.random.normal(ks[6], (FF_HIDDEN, C), jnp.float32) * s
    b1 = jax.random.normal(ks[7], (1, FF_HIDDEN), jnp.float32) * s
    w2 = jax.random.normal(ks[8], (C, FF_HIDDEN), jnp.float32) * s
    b2 = jax.random.normal(ks[9], (1, C), jnp.float32) * s

    params = (wk, wq, wv, wp, bp, w1, b1, w2, b2)
    ref = block_ref(x, params)

    # f32 matmul operands (exact path; v5e-friendly). Weight prep happens once here.
    block_f32 = make_block_forward(params)
    out = jax.block_until_ready(block_f32(x))
    assert out.shape == (B, T, C)
    assert jnp.allclose(out, ref, atol=2e-3, rtol=2e-3), "f32 kernel mismatch vs reference"

    # bf16 matmul operands (v6e/v7x MXU throughput path); f32 accumulation & elementwise.
    block_bf16 = make_block_forward(params, compute_dtype=jnp.bfloat16)
    out_bf16 = jax.block_until_ready(block_bf16(x))
    assert jnp.allclose(out_bf16, ref, atol=5e-2, rtol=5e-2), "bf16 kernel mismatch vs reference"

    print("KERNEL_OK")
</pallas_src>

<mosaic_0001>
module attributes {stable_mosaic.version = 11 : i64} {
  func.func @block_kernel(%arg0: i32, %arg1: memref<2x8x32xf32, #tpu.memory_space<vmem>>, %arg2: memref<16x16xf32, #tpu.memory_space<vmem>>, %arg3: memref<4x32x8xf32, #tpu.memory_space<vmem>>, %arg4: memref<4x32x8xf32, #tpu.memory_space<vmem>>, %arg5: memref<4x32x8xf32, #tpu.memory_space<vmem>>, %arg6: memref<4x8x32xf32, #tpu.memory_space<vmem>>, %arg7: memref<1x32xf32, #tpu.memory_space<vmem>>, %arg8: memref<32x128xf32, #tpu.memory_space<vmem>>, %arg9: memref<1x128xf32, #tpu.memory_space<vmem>>, %arg10: memref<128x32xf32, #tpu.memory_space<vmem>>, %arg11: memref<1x32xf32, #tpu.memory_space<vmem>>, %arg12: memref<2x8x32xf32, #tpu.memory_space<vmem>>) attributes {dimension_semantics = [#tpu.dimension_semantics<arbitrary>], iteration_bounds = array<i64: 1>, scalar_prefetch = 0 : i64, scratch_operands = 0 : i64, tpu.core_type = #tpu.core_type<tc>, window_params = [{transform_indices = @transform_0, window_bounds = array<i64: 2, 8, 32>}, {pipeline_mode = #tpu.pipeline_mode<synchronous>, transform_indices = @transform_1, window_bounds = array<i64: 16, 16>}, {pipeline_mode = #tpu.pipeline_mode<synchronous>, transform_indices = @transform_2, window_bounds = array<i64: 4, 32, 8>}, {pipeline_mode = #tpu.pipeline_mode<synchronous>, transform_indices = @transform_3, window_bounds = array<i64: 4, 32, 8>}, {pipeline_mode = #tpu.pipeline_mode<synchronous>, transform_indices = @transform_4, window_bounds = array<i64: 4, 32, 8>}, {pipeline_mode = #tpu.pipeline_mode<synchronous>, transform_indices = @transform_5, window_bounds = array<i64: 4, 8, 32>}, {pipeline_mode = #tpu.pipeline_mode<synchronous>, transform_indices = @transform_6, window_bounds = array<i64: 1, 32>}, {pipeline_mode = #tpu.pipeline_mode<synchronous>, transform_indices = @transform_7, window_bounds = array<i64: 32, 128>}, {pipeline_mode = #tpu.pipeline_mode<synchronous>, transform_indices = @transform_8, window_bounds = array<i64: 1, 128>}, {pipeline_mode = #tpu.pipeline_mode<synchronous>, transform_indices = @transform_9, window_bounds = array<i64: 128, 32>}, {pipeline_mode = #tpu.pipeline_mode<synchronous>, transform_indices = @transform_10, window_bounds = array<i64: 1, 32>}, {transform_indices = @transform_11, window_bounds = array<i64: 2, 8, 32>}]} {
    %c0 = arith.constant 0 : index
    %c0_0 = arith.constant 0 : index
    %c0_1 = arith.constant 0 : index
    %0 = vector.load %arg1[%c0, %c0_0, %c0_1] : memref<2x8x32xf32, #tpu.memory_space<vmem>>, vector<2x8x32xf32>
    %1 = vector.shape_cast %0 : vector<2x8x32xf32> to vector<16x32xf32>
    %2 = vector.shape_cast %1 : vector<16x32xf32> to vector<1x16x32xf32>
    %3 = vector.shape_cast %2 : vector<1x16x32xf32> to vector<1x16x32xf32>
    %4 = vector.broadcast %3 : vector<1x16x32xf32> to vector<4x16x32xf32>
    %c0_2 = arith.constant 0 : index
    %c0_3 = arith.constant 0 : index
    %c0_4 = arith.constant 0 : index
    %5 = vector.load %arg3[%c0_2, %c0_3, %c0_4] : memref<4x32x8xf32, #tpu.memory_space<vmem>>, vector<4x32x8xf32>
    "tpu.trace_start"() <{level = 10 : i32, message = "hmc,hcd->hmd"}> : () -> ()
    %cst = arith.constant dense<0.000000e+00> : vector<4x16x8xf32>
    %6 = tpu.matmul %4, %5, %cst {dimension_numbers = #tpu.dot_dimension_numbers<[2], [1], [1], [2], [0, 0, 0, 1, 1, 2], [0], [0]>} : vector<4x16x32xf32>, vector<4x32x8xf32>, vector<4x16x8xf32> -> vector<4x16x8xf32>
    "tpu.trace_stop"() : () -> ()
    %c0_5 = arith.constant 0 : index
    %c0_6 = arith.constant 0 : index
    %c0_7 = arith.constant 0 : index
    %7 = vector.load %arg4[%c0_5, %c0_6, %c0_7] : memref<4x32x8xf32, #tpu.memory_space<vmem>>, vector<4x32x8xf32>
    "tpu.trace_start"() <{level = 10 : i32, message = "hmc,hcd->hmd"}> : () -> ()
    %cst_8 = arith.constant dense<0.000000e+00> : vector<4x16x8xf32>
    %8 = tpu.matmul %4, %7, %cst_8 {dimension_numbers = #tpu.dot_dimension_numbers<[2], [1], [1], [2], [0, 0, 0, 1, 1, 2], [0], [0]>} : vector<4x16x32xf32>, vector<4x32x8xf32>, vector<4x16x8xf32> -> vector<4x16x8xf32>
    "tpu.trace_stop"() : () -> ()
    %c0_9 = arith.constant 0 : index
    %c0_10 = arith.constant 0 : index
    %c0_11 = arith.constant 0 : index
    %9 = vector.load %arg5[%c0_9, %c0_10, %c0_11] : memref<4x32x8xf32, #tpu.memory_space<vmem>>, vector<4x32x8xf32>
    "tpu.trace_start"() <{level = 10 : i32, message = "hmc,hcd->hmd"}> : () -> ()
    %cst_12 = arith.constant dense<0.000000e+00> : vector<4x16x8xf32>
    %10 = tpu.matmul %4, %9, %cst_12 {dimension_numbers = #tpu.dot_dimension_numbers<[2], [1], [1], [2], [0, 0, 0, 1, 1, 2], [0], [0]>} : vector<4x16x32xf32>, vector<4x32x8xf32>, vector<4x16x8xf32> -> vector<4x16x8xf32>
    "tpu.trace_stop"() : () -> ()
    "tpu.trace_start"() <{level = 10 : i32, message = "hqd,hkd->hqk"}> : () -> ()
    %cst_13 = arith.constant dense<0.000000e+00> : vector<4x16x16xf32>
    %11 = tpu.matmul %6, %8, %cst_13 {dimension_numbers = #tpu.dot_dimension_numbers<[2], [2], [1], [1], [0, 0, 0, 1, 1, 1], [0], [0]>} : vector<4x16x8xf32>, vector<4x16x8xf32>, vector<4x16x16xf32> -> vector<4x16x16xf32>
    "tpu.trace_stop"() : () -> ()
    %c0_14 = arith.constant 0 : index
    %c0_15 = arith.constant 0 : index
    %12 = vector.load %arg2[%c0_14, %c0_15] : memref<16x16xf32, #tpu.memory_space<vmem>>, vector<16x16xf32>
    %13 = vector.shape_cast %12 : vector<16x16xf32> to vector<1x16x16xf32>
    %14 = vector.broadcast %13 : vector<1x16x16xf32> to vector<4x16x16xf32>
    %15 = arith.addf %11, %14 : vector<4x16x16xf32>
    %cst_16 = arith.constant dense<0xFF800000> : vector<4x16xf32>
    %16 = vector.multi_reduction <maximumf>, %15, %cst_16 [2] : vector<4x16x16xf32> to vector<4x16xf32>
    %17 = vector.shape_cast %16 : vector<4x16xf32> to vector<4x16x1xf32>
    %18 = vector.broadcast %17 : vector<4x16x1xf32> to vector<4x16x16xf32>
    %19 = arith.subf %15, %18 : vector<4x16x16xf32>
    %20 = math.exp %19 : vector<4x16x16xf32>
    %cst_17 = arith.constant dense<0.000000e+00> : vector<4x16xf32>
    %21 = vector.multi_reduction <add>, %20, %cst_17 [2] : vector<4x16x16xf32> to vector<4x16xf32>
    %22 = vector.shape_cast %21 : vector<4x16xf32> to vector<4x16x1xf32>
    %23 = vector.broadcast %22 : vector<4x16x1xf32> to vector<4x16x16xf32>
    %24 = arith.divf %20, %23 : vector<4x16x16xf32>
    "tpu.trace_start"() <{level = 10 : i32, message = "hqk,hkd->hqd"}> : () -> ()
    %cst_18 = arith.constant dense<0.000000e+00> : vector<4x16x8xf32>
    %25 = tpu.matmul %24, %10, %cst_18 {dimension_numbers = #tpu.dot_dimension_numbers<[2], [1], [1], [2], [0, 0, 0, 1, 1, 2], [0], [0]>} : vector<4x16x16xf32>, vector<4x16x8xf32>, vector<4x16x8xf32> -> vector<4x16x8xf32>
    "tpu.trace_stop"() : () -> ()
    %c0_19 = arith.constant 0 : index
    %c0_20 = arith.constant 0 : index
    %c0_21 = arith.constant 0 : index
    %26 = vector.load %arg6[%c0_19, %c0_20, %c0_21] : memref<4x8x32xf32, #tpu.memory_space<vmem>>, vector<4x8x32xf32>
    "tpu.trace_start"() <{level = 10 : i32, message = "hmd,hdo->hmo"}> : () -> ()
    %cst_22 = arith.constant dense<0.000000e+00> : vector<4x16x32xf32>
    %27 = tpu.matmul %25, %26, %cst_22 {dimension_numbers = #tpu.dot_dimension_numbers<[2], [1], [1], [2], [0, 0, 0, 1, 1, 2], [0], [0]>} : vector<4x16x8xf32>, vector<4x8x32xf32>, vector<4x16x32xf32> -> vector<4x16x32xf32>
    "tpu.trace_stop"() : () -> ()
    %cst_23 = arith.constant dense<0.000000e+00> : vector<16x32xf32>
    %28 = vector.multi_reduction <add>, %27, %cst_23 [0] : vector<4x16x32xf32> to vector<16x32xf32>
    %c0_24 = arith.constant 0 : index
    %c0_25 = arith.constant 0 : index
    %29 = vector.load %arg7[%c0_24, %c0_25] : memref<1x32xf32, #tpu.memory_space<vmem>>, vector<1x32xf32>
    %30 = vector.shape_cast %29 : vector<1x32xf32> to vector<32xf32>
    %31 = vector.shape_cast %30 : vector<32xf32> to vector<1x32xf32>
    %32 = vector.broadcast %31 : vector<1x32xf32> to vector<16x32xf32>
    %33 = arith.addf %28, %32 : vector<16x32xf32>
    %34 = arith.addf %1, %33 : vector<16x32xf32>
    %c0_26 = arith.constant 0 : index
    %c0_27 = arith.constant 0 : index
    %35 = vector.load %arg8[%c0_26, %c0_27] : memref<32x128xf32, #tpu.memory_space<vmem>>, vector<32x128xf32>
    %cst_28 = arith.constant dense<0.000000e+00> : vector<16x128xf32>
    %36 = tpu.matmul %34, %35, %cst_28 {dimension_numbers = #tpu.dot_dimension_numbers<[1], [0], [0], [1], [0, 0, 1, 1], [], []>} : vector<16x32xf32>, vector<32x128xf32>, vector<16x128xf32> -> vector<16x128xf32>
    %c0_29 = arith.constant 0 : index
    %c0_30 = arith.constant 0 : index
    %37 = vector.load %arg9[%c0_29, %c0_30] : memref<1x128xf32, #tpu.memory_space<vmem>>, vector<1x128xf32>
    %38 = vector.shape_cast %37 : vector<1x128xf32> to vector<128xf32>
    %39 = vector.shape_cast %38 : vector<128xf32> to vector<1x128xf32>
    %40 = vector.broadcast %39 : vector<1x128xf32> to vector<16x128xf32>
    %41 = arith.addf %36, %40 : vector<16x128xf32>
    %cst_31 = arith.constant 0.000000e+00 : f32
    %42 = vector.broadcast %cst_31 : f32 to vector<16x128xf32>
    %43 = arith.maximumf %41, %42 : vector<16x128xf32>
    %c0_32 = arith.constant 0 : index
    %c0_33 = arith.constant 0 : index
    %44 = vector.load %arg10[%c0_32, %c0_33] : memref<128x32xf32, #tpu.memory_space<vmem>>, vector<128x32xf32>
    %cst_34 = arith.constant dense<0.000000e+00> : vector<16x32xf32>
    %45 = tpu.matmul %43, %44, %cst_34 {dimension_numbers = #tpu.dot_dimension_numbers<[1], [0], [0], [1], [0, 0, 1, 1], [], []>} : vector<16x128xf32>, vector<128x32xf32>, vector<16x32xf32> -> vector<16x32xf32>
    %c0_35 = arith.constant 0 : index
    %c0_36 = arith.constant 0 : index
    %46 = vector.load %arg11[%c0_35, %c0_36] : memref<1x32xf32, #tpu.memory_space<vmem>>, vector<1x32xf32>
    %47 = vector.shape_cast %46 : vector<1x32xf32> to vector<32xf32>
    %48 = vector.shape_cast %47 : vector<32xf32> to vector<1x32xf32>
    %49 = vector.broadcast %48 : vector<1x32xf32> to vector<16x32xf32>
    %50 = arith.addf %45, %49 : vector<16x32xf32>
    %51 = arith.addf %34, %50 : vector<16x32xf32>
    %52 = vector.shape_cast %51 : vector<16x32xf32> to vector<2x8x32xf32>
    %c0_37 = arith.constant 0 : index
    %c0_38 = arith.constant 0 : index
    %c0_39 = arith.constant 0 : index
    %53 = vector.load %arg12[%c0_37, %c0_38, %c0_39] : memref<2x8x32xf32, #tpu.memory_space<vmem>>, vector<2x8x32xf32>
    tpu.vector_store %arg12[%c0_37, %c0_38, %c0_39], %52 {strides = array<i32>} : memref<2x8x32xf32, #tpu.memory_space<vmem>>, vector<2x8x32xf32>,
    return
  }
  func.func @transform_0(%arg0: i32) -> (i32, i32, i32) {
    %c0_i32 = arith.constant 0 : i32
    %c0_i32_0 = arith.constant 0 : i32
    %c0_i32_1 = arith.constant 0 : i32
    return %arg0, %c0_i32, %c0_i32_0 : i32, i32, i32
  }
  func.func @transform_1(%arg0: i32) -> (i32, i32) {
    %c0_i32 = arith.constant 0 : i32
    %c0_i32_0 = arith.constant 0 : i32
    %c0_i32_1 = arith.constant 0 : i32
    return %c0_i32, %c0_i32_0 : i32, i32
  }
  func.func @transform_2(%arg0: i32) -> (i32, i32, i32) {
    %c0_i32 = arith.constant 0 : i32
    %c0_i32_0 = arith.constant 0 : i32
    %c0_i32_1 = arith.constant 0 : i32
    %c0_i32_2 = arith.constant 0 : i32
    return %c0_i32, %c0_i32_0, %c0_i32_1 : i32, i32, i32
  }
  func.func @transform_3(%arg0: i32) -> (i32, i32, i32) {
    %c0_i32 = arith.constant 0 : i32
    %c0_i32_0 = arith.constant 0 : i32
    %c0_i32_1 = arith.constant 0 : i32
    %c0_i32_2 = arith.constant 0 : i32
    return %c0_i32, %c0_i32_0, %c0_i32_1 : i32, i32, i32
  }
  func.func @transform_4(%arg0: i32) -> (i32, i32, i32) {
    %c0_i32 = arith.constant 0 : i32
    %c0_i32_0 = arith.constant 0 : i32
    %c0_i32_1 = arith.constant 0 : i32
    %c0_i32_2 = arith.constant 0 : i32
    return %c0_i32, %c0_i32_0, %c0_i32_1 : i32, i32, i32
  }
  func.func @transform_5(%arg0: i32) -> (i32, i32, i32) {
    %c0_i32 = arith.constant 0 : i32
    %c0_i32_0 = arith.constant 0 : i32
    %c0_i32_1 = arith.constant 0 : i32
    %c0_i32_2 = arith.constant 0 : i32
    return %c0_i32, %c0_i32_0, %c0_i32_1 : i32, i32, i32
  }
  func.func @transform_6(%arg0: i32) -> (i32, i32) {
    %c0_i32 = arith.constant 0 : i32
    %c0_i32_0 = arith.constant 0 : i32
    %c0_i32_1 = arith.constant 0 : i32
    return %c0_i32, %c0_i32_0 : i32, i32
  }
  func.func @transform_7(%arg0: i32) -> (i32, i32) {
    %c0_i32 = arith.constant 0 : i32
    %c0_i32_0 = arith.constant 0 : i32
    %c0_i32_1 = arith.constant 0 : i32
    return %c0_i32, %c0_i32_0 : i32, i32
  }
  func.func @transform_8(%arg0: i32) -> (i32, i32) {
    %c0_i32 = arith.constant 0 : i32
    %c0_i32_0 = arith.constant 0 : i32
    %c0_i32_1 = arith.constant 0 : i32
    return %c0_i32, %c0_i32_0 : i32, i32
  }
  func.func @transform_9(%arg0: i32) -> (i32, i32) {
    %c0_i32 = arith.constant 0 : i32
    %c0_i32_0 = arith.constant 0 : i32
    %c0_i32_1 = arith.constant 0 : i32
    return %c0_i32, %c0_i32_0 : i32, i32
  }
  func.func @transform_10(%arg0: i32) -> (i32, i32) {
    %c0_i32 = arith.constant 0 : i32
    %c0_i32_0 = arith.constant 0 : i32
    %c0_i32_1 = arith.constant 0 : i32
    return %c0_i32, %c0_i32_0 : i32, i32
  }
  func.func @transform_11(%arg0: i32) -> (i32, i32, i32) {
    %c0_i32 = arith.constant 0 : i32
    %c0_i32_0 = arith.constant 0 : i32
    %c0_i32_1 = arith.constant 0 : i32
    return %arg0, %c0_i32, %c0_i32_0 : i32, i32, i32
  }
}

</mosaic_0001>

<llo_original>
// kernel: _block_forward_impl.1
$region0: #{_block_forward_impl.1}
  #allocation0 [shape = 'u32[]', space=smem, size = 0x4, offset = 0x4, fixed_abs, tag = 'smem constant byte address 0x4 - core index']
  #allocation1 [shape = 'u32[144,128]{1,0:T(1,128)}', space=vmem, size = 0x12000, scoped, tag = 'internal scratch']
  %s0 = inlined_call_operand.vmem [shape: f32[2,8,32], index: 0, kind: input, shape index: {}]
  %s1 = inlined_call_operand.vmem [shape: f32[16,16], index: 1, kind: input, shape index: {}]
  %s2 = inlined_call_operand.vmem [shape: f32[4,32,8], index: 2, kind: input, shape index: {}]
  %s3 = inlined_call_operand.vmem [shape: f32[4,32,8], index: 3, kind: input, shape index: {}]
  %s4 = inlined_call_operand.vmem [shape: f32[4,32,8], index: 4, kind: input, shape index: {}]
  %s5 = inlined_call_operand.vmem [shape: f32[4,8,32], index: 5, kind: input, shape index: {}]
  %s6 = inlined_call_operand.vmem [shape: f32[1,32], index: 6, kind: input, shape index: {}]
  %s7 = inlined_call_operand.vmem [shape: f32[32,128], index: 7, kind: input, shape index: {}]
  %s8 = inlined_call_operand.vmem [shape: f32[1,128], index: 8, kind: input, shape index: {}]
  %s9 = inlined_call_operand.vmem [shape: f32[128,32], index: 9, kind: input, shape index: {}]
  %s10 = inlined_call_operand.vmem [shape: f32[1,32], index: 10, kind: input, shape index: {}]
  %s11 = inlined_call_operand.hbm [shape: f32[2,8,32], index: 11, kind: output, shape index: {}]
  %s12 = sld [smem:[#allocation0]]
  $region54: #{_block_forward_impl.1} parent=0
    _
  %s14 = ssub.s32 1, %s12
  %s15 = scalar_select 0, %s14, %s12
  $region1: #{_block_forward_impl.1} parent=0
    #allocation2 [shape = 'u8[8192]{0}', space=vmem, size = 0x2000, scoped, tag = 'output window, operand 0, single buffered']
    #allocation3 [shape = 's32[1]{0}', space=sflag, size = 0x4, scoped, tag = 'scoped memory for _block_forward_impl.1']
    %16 = vsyncpa [#allocation3], 0
    // Predicated region
    $region2: #{_block_forward_impl.1} parent=1 // pred_check
      _
    $region3: #{_block_forward_impl.1} parent=1 // pred_check_branch
      %18 = sbr.rel (0) target = $region5
    $region4: #{_block_forward_impl.1} parent=1 // pred_region
      _
    $region5: #{_block_forward_impl.1} parent=1 // pred_fallthru
      _
    // Predicated region
    $region6: #{_block_forward_impl.1} parent=1 // pred_check
      _
    $region7: #{_block_forward_impl.1} parent=1 // pred_check_branch
      %20 = sbr.rel (0) target = $region9
    $region8: #{_block_forward_impl.1} parent=1 // pred_region
      _
    $region9: #{_block_forward_impl.1} parent=1 // pred_fallthru
      _
    // Predicated region
    $region10: #{_block_forward_impl.1} parent=1 // pred_check
      _
    $region11: #{_block_forward_impl.1} parent=1 // pred_check_branch
      %22 = sbr.rel (0) target = $region13
    $region12: #{_block_forward_impl.1} parent=1 // pred_region
      _
    $region13: #{_block_forward_impl.1} parent=1 // pred_fallthru
      _
    // Predicated region
    $region14: #{_block_forward_impl.1} parent=1 // pred_check
      _
    $region15: #{_block_forward_impl.1} parent=1 // pred_check_branch
      %24 = sbr.rel (0) target = $region17
    $region16: #{_block_forward_impl.1} parent=1 // pred_region
      _
    $region17: #{_block_forward_impl.1} parent=1 // pred_fallthru
      _
    // Predicated region
    $region18: #{_block_forward_impl.1} parent=1 // pred_check
      _
    $region19: #{_block_forward_impl.1} parent=1 // pred_check_branch
      %26 = sbr.rel (0) target = $region21
    $region20: #{_block_forward_impl.1} parent=1 // pred_region
      _
    $region21: #{_block_forward_impl.1} parent=1 // pred_fallthru
      _
    // Predicated region
    $region22: #{_block_forward_impl.1} parent=1 // pred_check
      _
    $region23: #{_block_forward_impl.1} parent=1 // pred_check_branch
      %28 = sbr.rel (0) target = $region25
    $region24: #{_block_forward_impl.1} parent=1 // pred_region
      _
    $region25: #{_block_forward_impl.1} parent=1 // pred_fallthru
      _
    // Predicated region
    $region26: #{_block_forward_impl.1} parent=1 // pred_check
      _
    $region27: #{_block_forward_impl.1} parent=1 // pred_check_branch
      %30 = sbr.rel (0) target = $region29
    $region28: #{_block_forward_impl.1} parent=1 // pred_region
      _
    $region29: #{_block_forward_impl.1} parent=1 // pred_fallthru
      _
    // Predicated region
    $region30: #{_block_forward_impl.1} parent=1 // pred_check
      _
    $region31: #{_block_forward_impl.1} parent=1 // pred_check_branch
      %32 = sbr.rel (0) target = $region33
    $region32: #{_block_forward_impl.1} parent=1 // pred_region
      _
    $region33: #{_block_forward_impl.1} parent=1 // pred_fallthru
      _
    // Predicated region
    $region34: #{_block_forward_impl.1} parent=1 // pred_check
      _
    $region35: #{_block_forward_impl.1} parent=1 // pred_check_branch
      %34 = sbr.rel (0) target = $region37
    $region36: #{_block_forward_impl.1} parent=1 // pred_region
      _
    $region37: #{_block_forward_impl.1} parent=1 // pred_fallthru
      _
    // Predicated region
    $region38: #{_block_forward_impl.1} parent=1 // pred_check
      _
    $region39: #{_block_forward_impl.1} parent=1 // pred_check_branch
      %36 = sbr.rel (0) target = $region41
    $region40: #{_block_forward_impl.1} parent=1 // pred_region
      _
    $region41: #{_block_forward_impl.1} parent=1 // pred_fallthru
      _
    // Predicated region
    $region42: #{_block_forward_impl.1} parent=1 // pred_check
      _
    $region43: #{_block_forward_impl.1} parent=1 // pred_check_branch
      %38 = sbr.rel (0) target = $region45
    $region44: #{_block_forward_impl.1} parent=1 // pred_region
      _
    $region45: #{_block_forward_impl.1} parent=1 // pred_fallthru
      _
    %v39 = vld [vmem:[%s0] sm:$0xff]
    %v40 = vld [vmem:[%s0 + $0x8] sm:$0xff]
    %v41 = vld [vmem:[%s2] sm:$0xff]
    %v42 = vld [vmem:[%s2 + $0x8] sm:$0xff]
    %v43 = vld [vmem:[%s2 + $0x10] sm:$0xff]
    %v44 = vld [vmem:[%s2 + $0x18] sm:$0xff]
    %v45 = vld [vmem:[%s2 + $0x20] sm:$0xff]
    %v46 = vld [vmem:[%s2 + $0x28] sm:$0xff]
    %v47 = vld [vmem:[%s2 + $0x30] sm:$0xff]
    %v48 = vld [vmem:[%s2 + $0x38] sm:$0xff]
    %v49 = vld [vmem:[%s2 + $0x40] sm:$0xff]
    %v50 = vld [vmem:[%s2 + $0x48] sm:$0xff]
    %v51 = vld [vmem:[%s2 + $0x50] sm:$0xff]
    %v52 = vld [vmem:[%s2 + $0x58] sm:$0xff]
    %v53 = vld [vmem:[%s2 + $0x60] sm:$0xff]
    %v54 = vld [vmem:[%s2 + $0x68] sm:$0xff]
    %v55 = vld [vmem:[%s2 + $0x70] sm:$0xff]
    %v56 = vld [vmem:[%s2 + $0x78] sm:$0xff]
    %vm57 = vcmask 261120
    %v59 = vsel %vm57, %v39, 0
    %v62 = vsel %vm57, %v40, 0
    %64 = vmatprep.subr.mxu0 0.0
    %65 = vmatpush1.msra.mxu0 %v41
    %66 = vmatprep.subr.mxu0 0.0
    %67 = vmatpush1.msra.mxu0 %v42
    %68 = vmatprep.subr.mxu0 0.0
    %69 = vmatpush1.msra.mxu0 %v43
    %70 = vmatprep.subr.mxu0 0.0
    %71 = vmatpush1.msra.mxu0 %v44
    %72 = vmatprep.subr.mxu0 0.0
    %73 = vmatpush1.msra.mxu0 0.0
    %74 = vmatprep.subr.mxu0 0.0
    %75 = vmatpush1.msra.mxu0 0.0
    %76 = vmatprep.subr.mxu0 0.0
    %77 = vmatpush1.msra.mxu0 0.0
    %78 = vmatprep.subr.mxu0 0.0
    %79 = vmatpush1.msra.mxu0 0.0
    %80 = vmatprep.subr.mxu0 0.0
    %81 = vmatpush1.msra.mxu0 0.0
    %82 = vmatprep.subr.mxu0 0.0
    %83 = vmatpush1.msra.mxu0 0.0
    %84 = vmatprep.subr.mxu0 0.0
    %85 = vmatpush1.msra.mxu0 0.0
    %86 = vmatprep.subr.mxu0 0.0
    %87 = vmatpush1.msra.mxu0 0.0
    %88 = vmatprep.subr.mxu0 0.0
    %89 = vmatpush1.msra.mxu0 0.0
    %90 = vmatprep.subr.mxu0 0.0
    %91 = vmatpush1.msra.mxu0 0.0
    %92 = vmatprep.subr.mxu0 0.0
    %93 = vmatpush1.msra.mxu0 0.0
    %94 = vmatprep.subr.mxu0 0.0
    %95 = vmatpush1.msra.mxu0 0.0
    %96 = vmatprep.subr.mxu0 0.0
    %97 = vmatpush1.msra.mxu0 0.0
    %98 = vmatprep.subr.mxu0 0.0
    %99 = vmatpush1.msra.mxu0 0.0
    %100 = vmatprep.subr.mxu0 0.0
    %101 = vmatpush1.msra.mxu0 0.0
    %102 = vmatprep.subr.mxu0 0.0
    %103 = vmatpush1.msra.mxu0 0.0
    %104 = vmatprep.subr.mxu0 0.0
    %105 = vmatpush1.msra.mxu0 0.0
    %106 = vmatprep.subr.mxu0 0.0
    %107 = vmatpush1.msra.mxu0 0.0
    %108 = vmatprep.subr.mxu0 0.0
    %109 = vmatpush1.msra.mxu0 0.0
    %110 = vmatprep.subr.mxu0 0.0
    %111 = vmatpush1.msra.mxu0 0.0
    %112 = vmatprep.subr.mxu0 0.0
    %113 = vmatpush1.msra.mxu0 0.0
    %114 = vmatprep.subr.mxu0 0.0
    %115 = vmatpush1.msra.mxu0 0.0
    %116 = vmatprep.subr.mxu0 0.0
    %117 = vmatpush1.msra.mxu0 0.0
    %118 = vmatprep.subr.mxu0 0.0
    %119 = vmatpush1.msra.mxu0 0.0
    %120 = vmatprep.subr.mxu0 0.0
    %121 = vmatpush1.msra.mxu0 0.0
    %122 = vmatprep.subr.mxu0 0.0
    %123 = vmatpush1.msra.mxu0 0.0
    %124 = vmatprep.subr.mxu0 0.0
    %125 = vmatpush1.msra.mxu0 0.0
    %126 = vmatprep.subr.mxu0 0.0
    %127 = vmatpush1.msra.mxu0 0.0
    %128 = vmatprep.mubr.f32.mxu0 0.0
    %129 = vmatmul.mubr.f32.gmra.mrb[0].mxu0 %v59
    %v130 = vpop.f32.mrb[0].mxu0
    %v131 = vadd.f32 0.0, %v130
    %v132 = vpop.f32.mrb[0].mxu0
    %133 = vmatprep.mubr.f32.mxu0 0.0
    %134 = vmatmul.mubr.f32.gmra.mrb[0].mxu0 %v62
    %v135 = vpop.f32.mrb[0].mxu0
    %v136 = vadd.f32 0.0, %v135
    %v137 = vpop.f32.mrb[0].mxu0
    %138 = vdwg.mxu0
    %139 = vmatprep.subr.mxu0 0.0
    %140 = vmatpush1.msra.mxu0 %v45
    %141 = vmatprep.subr.mxu0 0.0
    %142 = vmatpush1.msra.mxu0 %v46
    %143 = vmatprep.subr.mxu0 0.0
    %144 = vmatpush1.msra.mxu0 %v47
    %145 = vmatprep.subr.mxu0 0.0
    %146 = vmatpush1.msra.mxu0 %v48
    %147 = vmatprep.subr.mxu0 0.0
    %148 = vmatpush1.msra.mxu0 0.0
    %149 = vmatprep.subr.mxu0 0.0
    %150 = vmatpush1.msra.mxu0 0.0
    %151 = vmatprep.subr.mxu0 0.0
    %152 = vmatpush1.msra.mxu0 0.0
    %153 = vmatprep.subr.mxu0 0.0
    %154 = vmatpush1.msra.mxu0 0.0
    %155 = vmatprep.subr.mxu0 0.0
    %156 = vmatpush1.msra.mxu0 0.0
    %157 = vmatprep.subr.mxu0 0.0
    %158 = vmatpush1.msra.mxu0 0.0
    %159 = vmatprep.subr.mxu0 0.0
    %160 = vmatpush1.msra.mxu0 0.0
    %161 = vmatprep.subr.mxu0 0.0
    %162 = vmatpush1.msra.mxu0 0.0
    %163 = vmatprep.subr.mxu0 0.0
    %164 = vmatpush1.msra.mxu0 0.0
    %165 = vmatprep.subr.mxu0 0.0
    %166 = vmatpush1.msra.mxu0 0.0
    %167 = vmatprep.subr.mxu0 0.0
    %168 = vmatpush1.msra.mxu0 0.0
    %169 = vmatprep.subr.mxu0 0.0
    %170 = vmatpush1.msra.mxu0 0.0
    %171 = vmatprep.subr.mxu0 0.0
    %172 = vmatpush1.msra.mxu0 0.0
    %173 = vmatprep.subr.mxu0 0.0
    %174 = vmatpush1.msra.mxu0 0.0
    %175 = vmatprep.subr.mxu0 0.0
    %176 = vmatpush1.msra.mxu0 0.0
    %177 = vmatprep.subr.mxu0 0.0
    %178 = vmatpush1.msra.mxu0 0.0
    %179 = vmatprep.subr.mxu0 0.0
    %180 = vmatpush1.msra.mxu0 0.0
    %181 = vmatprep.subr.mxu0 0.0
    %182 = vmatpush1.msra.mxu0 0.0
    %183 = vmatprep.subr.mxu0 0.0
    %184 = vmatpush1.msra.mxu0 0.0
    %185 = vmatprep.subr.mxu0 0.0
    %186 = vmatpush1.msra.mxu0 0.0
    %187 = vmatprep.subr.mxu0 0.0
    %188 = vmatpush1.msra.mxu0 0.0
    %189 = vmatprep.subr.mxu0 0.0
    %190 = vmatpush1.msra.mxu0 0.0
    %191 = vmatprep.subr.mxu0 0.0
    %192 = vmatpush1.msra.mxu0 0.0
    %193 = vmatprep.subr.mxu0 0.0
    %194 = vmatpush1.msra.mxu0 0.0
    %195 = vmatprep.subr.mxu0 0.0
    %196 = vmatpush1.msra.mxu0 0.0
    %197 = vmatprep.subr.mxu0 0.0
    %198 = vmatpush1.msra.mxu0 0.0
    %199 = vmatprep.subr.mxu0 0.0
    %200 = vmatpush1.msra.mxu0 0.0
    %201 = vmatprep.subr.mxu0 0.0
    %202 = vmatpush1.msra.mxu0 0.0
    %203 = vmatprep.mubr.f32.mxu0 0.0
    %204 = vmatmul.mubr.f32.gmra.mrb[0].mxu0 %v59
    %v205 = vpop.f32.mrb[0].mxu0
    %v206 = vadd.f32 0.0, %v205
    %v207 = vpop.f32.mrb[0].mxu0
    %208 = vmatprep.mubr.f32.mxu0 0.0
    %209 = vmatmul.mubr.f32.gmra.mrb[0].mxu0 %v62
    %v210 = vpop.f32.mrb[0].mxu0
    %v211 = vadd.f32 0.0, %v210
    %v212 = vpop.f32.mrb[0].mxu0
    %213 = vdwg.mxu0
    %214 = vmatprep.subr.mxu0 0.0
    %215 = vmatpush1.msra.mxu0 %v49
    %216 = vmatprep.subr.mxu0 0.0
    %217 = vmatpush1.msra.mxu0 %v50
    %218 = vmatprep.subr.mxu0 0.0
    %219 = vmatpush1.msra.mxu0 %v51
    %220 = vmatprep.subr.mxu0 0.0
    %221 = vmatpush1.msra.mxu0 %v52
    %222 = vmatprep.subr.mxu0 0.0
    %223 = vmatpush1.msra.mxu0 0.0
    %224 = vmatprep.subr.mxu0 0.0
    %225 = vmatpush1.msra.mxu0 0.0
    %226 = vmatprep.subr.mxu0 0.0
    %227 = vmatpush1.msra.mxu0 0.0
    %228 = vmatprep.subr.mxu0 0.0
    %229 = vmatpush1.msra.mxu0 0.0
    %230 = vmatprep.subr.mxu0 0.0
    %231 = vmatpush1.msra.mxu0 0.0
    %232 = vmatprep.subr.mxu0 0.0
    %233 = vmatpush1.msra.mxu0 0.0
    %234 = vmatprep.subr.mxu0 0.0
    %235 = vmatpush1.msra.mxu0 0.0
    %236 = vmatprep.subr.mxu0 0.0
    %237 = vmatpush1.msra.mxu0 0.0
    %238 = vmatprep.subr.mxu0 0.0
    %239 = vmatpush1.msra.mxu0 0.0
    %240 = vmatprep.subr.mxu0 0.0
    %241 = vmatpush1.msra.mxu0 0.0
    %242 = vmatprep.subr.mxu0 0.0
    %243 = vmatpush1.msra.mxu0 0.0
    %244 = vmatprep.subr.mxu0 0.0
    %245 = vmatpush1.msra.mxu0 0.0
    %246 = vmatprep.subr.mxu0 0.0
    %247 = vmatpush1.msra.mxu0 0.0
    %248 = vmatprep.subr.mxu0 0.0
    %249 = vmatpush1.msra.mxu0 0.0
    %250 = vmatprep.subr.mxu0 0.0
    %251 = vmatpush1.msra.mxu0 0.0
    %252 = vmatprep.subr.mxu0 0.0
    %253 = vmatpush1.msra.mxu0 0.0
    %254 = vmatprep.subr.mxu0 0.0
    %255 = vmatpush1.msra.mxu0 0.0
    %256 = vmatprep.subr.mxu0 0.0
    %257 = vmatpush1.msra.mxu0 0.0
    %258 = vmatprep.subr.mxu0 0.0
    %259 = vmatpush1.msra.mxu0 0.0
    %260 = vmatprep.subr.mxu0 0.0
    %261 = vmatpush1.msra.mxu0 0.0
    %262 = vmatprep.subr.mxu0 0.0
    %263 = vmatpush1.msra.mxu0 0.0
    %264 = vmatprep.subr.mxu0 0.0
    %265 = vmatpush1.msra.mxu0 0.0
    %266 = vmatprep.subr.mxu0 0.0
    %267 = vmatpush1.msra.mxu0 0.0
    %268 = vmatprep.subr.mxu0 0.0
    %269 = vmatpush1.msra.mxu0 0.0
    %270 = vmatprep.subr.mxu0 0.0
    %271 = vmatpush1.msra.mxu0 0.0
    %272 = vmatprep.subr.mxu0 0.0
    %273 = vmatpush1.msra.mxu0 0.0
    %274 = vmatprep.subr.mxu0 0.0
    %275 = vmatpush1.msra.mxu0 0.0
    %276 = vmatprep.subr.mxu0 0.0
    %277 = vmatpush1.msra.mxu0 0.0
    %278 = vmatprep.mubr.f32.mxu0 0.0
    %279 = vmatmul.mubr.f32.gmra.mrb[0].mxu0 %v59
    %v280 = vpop.f32.mrb[0].mxu0
    %v281 = vadd.f32 0.0, %v280
    %v282 = vpop.f32.mrb[0].mxu0
    %283 = vmatprep.mubr.f32.mxu0 0.0
    %284 = vmatmul.mubr.f32.gmra.mrb[0].mxu0 %v62
    %v285 = vpop.f32.mrb[0].mxu0
    %v286 = vadd.f32 0.0, %v285
    %v287 = vpop.f32.mrb[0].mxu0
    %288 = vdwg.mxu0
    %289 = vmatprep.subr.mxu0 0.0
    %290 = vmatpush1.msra.mxu0 %v53
    %291 = vmatprep.subr.mxu0 0.0
    %292 = vmatpush1.msra.mxu0 %v54
    %293 = vmatprep.subr.mxu0 0.0
    %294 = vmatpush1.msra.mxu0 %v55
    %295 = vmatprep.subr.mxu0 0.0
    %296 = vmatpush1.msra.mxu0 %v56
    %297 = vmatprep.subr.mxu0 0.0
    %298 = vmatpush1.msra.mxu0 0.0
    %299 = vmatprep.subr.mxu0 0.0
    %300 = vmatpush1.msra.mxu0 0.0
    %301 = vmatprep.subr.mxu0 0.0
    %302 = vmatpush1.msra.mxu0 0.0
    %303 = vmatprep.subr.mxu0 0.0
    %304 = vmatpush1.msra.mxu0 0.0
    %305 = vmatprep.subr.mxu0 0.0
    %306 = vmatpush1.msra.mxu0 0.0
    %307 = vmatprep.subr.mxu0 0.0
    %308 = vmatpush1.msra.mxu0 0.0
    %309 = vmatprep.subr.mxu0 0.0
    %310 = vmatpush1.msra.mxu0 0.0
    %311 = vmatprep.subr.mxu0 0.0
    %312 = vmatpush1.msra.mxu0 0.0
    %313 = vmatprep.subr.mxu0 0.0
    %314 = vmatpush1.msra.mxu0 0.0
    %315 = vmatprep.subr.mxu0 0.0
    %316 = vmatpush1.msra.mxu0 0.0
    %317 = vmatprep.subr.mxu0 0.0
    %318 = vmatpush1.msra.mxu0 0.0
    %319 = vmatprep.subr.mxu0 0.0
    %320 = vmatpush1.msra.mxu0 0.0
    %321 = vmatprep.subr.mxu0 0.0
    %322 = vmatpush1.msra.mxu0 0.0
    %323 = vmatprep.subr.mxu0 0.0
    %324 = vmatpush1.msra.mxu0 0.0
    %325 = vmatprep.subr.mxu0 0.0
    %326 = vmatpush1.msra.mxu0 0.0
    %327 = vmatprep.subr.mxu0 0.0
    %328 = vmatpush1.msra.mxu0 0.0
    %329 = vmatprep.subr.mxu0 0.0
    %330 = vmatpush1.msra.mxu0 0.0
    %331 = vmatprep.subr.mxu0 0.0
    %332 = vmatpush1.msra.mxu0 0.0
    %333 = vmatprep.subr.mxu0 0.0
    %334 = vmatpush1.msra.mxu0 0.0
    %335 = vmatprep.subr.mxu0 0.0
    %336 = vmatpush1.msra.mxu0 0.0
    %337 = vmatprep.subr.mxu0 0.0
    %338 = vmatpush1.msra.mxu0 0.0
    %339 = vmatprep.subr.mxu0 0.0
    %340 = vmatpush1.msra.mxu0 0.0
    %341 = vmatprep.subr.mxu0 0.0
    %342 = vmatpush1.msra.mxu0 0.0
    %343 = vmatprep.subr.mxu0 0.0
    %344 = vmatpush1.msra.mxu0 0.0
    %345 = vmatprep.subr.mxu0 0.0
    %346 = vmatpush1.msra.mxu0 0.0
    %347 = vmatprep.subr.mxu0 0.0
    %348 = vmatpush1.msra.mxu0 0.0
    %349 = vmatprep.subr.mxu0 0.0
    %350 = vmatpush1.msra.mxu0 0.0
    %351 = vmatprep.subr.mxu0 0.0
    %352 = vmatpush1.msra.mxu0 0.0
    %353 = vmatprep.mubr.f32.mxu0 0.0
    %354 = vmatmul.mubr.f32.gmra.mrb[0].mxu0 %v59
    %v355 = vpop.f32.mrb[0].mxu0
    %v356 = vadd.f32 0.0, %v355
    %v357 = vpop.f32.mrb[0].mxu0
    %358 = vmatprep.mubr.f32.mxu0 0.0
    %359 = vmatmul.mubr.f32.gmra.mrb[0].mxu0 %v62
    %v360 = vpop.f32.mrb[0].mxu0
    %v361 = vadd.f32 0.0, %v360
    %v362 = vpop.f32.mrb[0].mxu0
    %363 = vdwg.mxu0
    %v364 = vld [vmem:[%s3] sm:$0xff]
    %v365 = vld [vmem:[%s3 + $0x8] sm:$0xff]
    %v366 = vld [vmem:[%s3 + $0x10] sm:$0xff]
    %v367 = vld [vmem:[%s3 + $0x18] sm:$0xff]
    %v368 = vld [vmem:[%s3 + $0x20] sm:$0xff]
    %v369 = vld [vmem:[%s3 + $0x28] sm:$0xff]
    %v370 = vld [vmem:[%s3 + $0x30] sm:$0xff]
    %v371 = vld [vmem:[%s3 + $0x38] sm:$0xff]
    %v372 = vld [vmem:[%s3 + $0x40] sm:$0xff]
    %v373 = vld [vmem:[%s3 + $0x48] sm:$0xff]
    %v374 = vld [vmem:[%s3 + $0x50] sm:$0xff]
    %v375 = vld [vmem:[%s3 + $0x58] sm:$0xff]
    %v376 = vld [vmem:[%s3 + $0x60] sm:$0xff]
    %v377 = vld [vmem:[%s3 + $0x68] sm:$0xff]
    %v378 = vld [vmem:[%s3 + $0x70] sm:$0xff]
    %v379 = vld [vmem:[%s3 + $0x78] sm:$0xff]
    %380 = vmatprep.subr.mxu0 0.0
    %381 = vmatpush1.msra.mxu0 %v364
    %382 = vmatprep.subr.mxu0 0.0
    %383 = vmatpush1.msra.mxu0 %v365
    %384 = vmatprep.subr.mxu0 0.0
    %385 = vmatpush1.msra.mxu0 %v366
    %386 = vmatprep.subr.mxu0 0.0
    %387 = vmatpush1.msra.mxu0 %v367
    %388 = vmatprep.subr.mxu0 0.0
    %389 = vmatpush1.msra.mxu0 0.0
    %390 = vmatprep.subr.mxu0 0.0
    %391 = vmatpush1.msra.mxu0 0.0
    %392 = vmatprep.subr.mxu0 0.0
    %393 = vmatpush1.msra.mxu0 0.0
    %394 = vmatprep.subr.mxu0 0.0
    %395 = vmatpush1.msra.mxu0 0.0
    %396 = vmatprep.subr.mxu0 0.0
    %397 = vmatpush1.msra.mxu0 0.0
    %398 = vmatprep.subr.mxu0 0.0
    %399 = vmatpush1.msra.mxu0 0.0
    %400 = vmatprep.subr.mxu0 0.0
    %401 = vmatpush1.msra.mxu0 0.0
    %402 = vmatprep.subr.mxu0 0.0
    %403 = vmatpush1.msra.mxu0 0.0
    %404 = vmatprep.subr.mxu0 0.0
    %405 = vmatpush1.msra.mxu0 0.0
    %406 = vmatprep.subr.mxu0 0.0
    %407 = vmatpush1.msra.mxu0 0.0
    %408 = vmatprep.subr.mxu0 0.0
    %409 = vmatpush1.msra.mxu0 0.0
    %410 = vmatprep.subr.mxu0 0.0
    %411 = vmatpush1.msra.mxu0 0.0
    %412 = vmatprep.subr.mxu0 0.0
    %413 = vmatpush1.msra.mxu0 0.0
    %414 = vmatprep.subr.mxu0 0.0
    %415 = vmatpush1.msra.mxu0 0.0
    %416 = vmatprep.subr.mxu0 0.0
    %417 = vmatpush1.msra.mxu0 0.0
    %418 = vmatprep.subr.mxu0 0.0
    %419 = vmatpush1.msra.mxu0 0.0
    %420 = vmatprep.subr.mxu0 0.0
    %421 = vmatpush1.msra.mxu0 0.0
    %422 = vmatprep.subr.mxu0 0.0
    %423 = vmatpush1.msra.mxu0 0.0
    %424 = vmatprep.subr.mxu0 0.0
    %425 = vmatpush1.msra.mxu0 0.0
    %426 = vmatprep.subr.mxu0 0.0
    %427 = vmatpush1.msra.mxu0 0.0
    %428 = vmatprep.subr.mxu0 0.0
    %429 = vmatpush1.msra.mxu0 0.0
    %430 = vmatprep.subr.mxu0 0.0
    %431 = vmatpush1.msra.mxu0 0.0
    %432 = vmatprep.subr.mxu0 0.0
    %433 = vmatpush1.msra.mxu0 0.0
    %434 = vmatprep.subr.mxu0 0.0
    %435 = vmatpush1.msra.mxu0 0.0
    %436 = vmatprep.subr.mxu0 0.0
    %437 = vmatpush1.msra.mxu0 0.0
    %438 = vmatprep.subr.mxu0 0.0
    %439 = vmatpush1.msra.mxu0 0.0
    %440 = vmatprep.subr.mxu0 0.0
    %441 = vmatpush1.msra.mxu0 0.0
    %442 = vmatprep.subr.mxu0 0.0
    %443 = vmatpush1.msra.mxu0 0.0
    %444 = vmatprep.mubr.f32.mxu0 0.0
    %445 = vmatmul.mubr.f32.gmra.mrb[0].mxu0 %v59
    %v446 = vpop.f32.mrb[0].mxu0
    %v447 = vadd.f32 0.0, %v446
    %v448 = vpop.f32.mrb[0].mxu0
    %449 = vmatprep.mubr.f32.mxu0 0.0
    %450 = vmatmul.mubr.f32.gmra.mrb[0].mxu0 %v62
    %v451 = vpop.f32.mrb[0].mxu0
    %v452 = vadd.f32 0.0, %v451
    %v453 = vpop.f32.mrb[0].mxu0
    %454 = vdwg.mxu0
    %455 = vmatprep.subr.mxu0 0.0
    %456 = vmatpush1.msra.mxu0 %v368
    %457 = vmatprep.subr.mxu0 0.0
    %458 = vmatpush1.msra.mxu0 %v369
    %459 = vmatprep.subr.mxu0 0.0
    %460 = vmatpush1.msra.mxu0 %v370
    %461 = vmatprep.subr.mxu0 0.0
    %462 = vmatpush1.msra.mxu0 %v371
    %463 = vmatprep.subr.mxu0 0.0
    %464 = vmatpush1.msra.mxu0 0.0
    %465 = vmatprep.subr.mxu0 0.0
    %466 = vmatpush1.msra.mxu0 0.0
    %467 = vmatprep.subr.mxu0 0.0
    %468 = vmatpush1.msra.mxu0 0.0
    %469 = vmatprep.subr.mxu0 0.0
    %470 = vmatpush1.msra.mxu0 0.0
    %471 = vmatprep.subr.mxu0 0.0
    %472 = vmatpush1.msra.mxu0 0.0
    %473 = vmatprep.subr.mxu0 0.0
    %474 = vmatpush1.msra.mxu0 0.0
    %475 = vmatprep.subr.mxu0 0.0
    %476 = vmatpush1.msra.mxu0 0.0
    %477 = vmatprep.subr.mxu0 0.0
    %478 = vmatpush1.msra.mxu0 0.0
    %479 = vmatprep.subr.mxu0 0.0
    %480 = vmatpush1.msra.mxu0 0.0
    %481 = vmatprep.subr.mxu0 0.0
    %482 = vmatpush1.msra.mxu0 0.0
    %483 = vmatprep.subr.mxu0 0.0
    %484 = vmatpush1.msra.mxu0 0.0
    %485 = vmatprep.subr.mxu0 0.0
    %486 = vmatpush1.msra.mxu0 0.0
    %487 = vmatprep.subr.mxu0 0.0
    %488 = vmatpush1.msra.mxu0 0.0
    %489 = vmatprep.subr.mxu0 0.0
    %490 = vmatpush1.msra.mxu0 0.0
    %491 = vmatprep.subr.mxu0 0.0
    %492 = vmatpush1.msra.mxu0 0.0
    %493 = vmatprep.subr.mxu0 0.0
    %494 = vmatpush1.msra.mxu0 0.0
    %495 = vmatprep.subr.mxu0 0.0
    %496 = vmatpush1.msra.mxu0 0.0
    %497 = vmatprep.subr.mxu0 0.0
    %498 = vmatpush1.msra.mxu0 0.0
    %499 = vmatprep.subr.mxu0 0.0
    %500 = vmatpush1.msra.mxu0 0.0
    %501 = vmatprep.subr.mxu0 0.0
    %502 = vmatpush1.msra.mxu0 0.0
    %503 = vmatprep.subr.mxu0 0.0
    %504 = vmatpush1.msra.mxu0 0.0
    %505 = vmatprep.subr.mxu0 0.0
    %506 = vmatpush1.msra.mxu0 0.0
    %507 = vmatprep.subr.mxu0 0.0
    %508 = vmatpush1.msra.mxu0 0.0
    %509 = vmatprep.subr.mxu0 0.0
    %510 = vmatpush1.msra.mxu0 0.0
    %511 = vmatprep.subr.mxu0 0.0
    %512 = vmatpush1.msra.mxu0 0.0
    %513 = vmatprep.subr.mxu0 0.0
    %514 = vmatpush1.msra.mxu0 0.0
    %515 = vmatprep.subr.mxu0 0.0
    %516 = vmatpush1.msra.mxu0 0.0
    %517 = vmatprep.subr.mxu0 0.0
    %518 = vmatpush1.msra.mxu0 0.0
    %519 = vmatprep.mubr.f32.mxu0 0.0
    %520 = vmatmul.mubr.f32.gmra.mrb[0].mxu0 %v59
    %v521 = vpop.f32.mrb[0].mxu0
    %v522 = vadd.f32 0.0, %v521
    %v523 = vpop.f32.mrb[0].mxu0
    %524 = vmatprep.mubr.f32.mxu0 0.0
    %525 = vmatmul.mubr.f32.gmra.mrb[0].mxu0 %v62
    %v526 = vpop.f32.mrb[0].mxu0
    %v527 = vadd.f32 0.0, %v526
    %v528 = vpop.f32.mrb[0].mxu0
    %529 = vdwg.mxu0
    %530 = vmatprep.subr.mxu0 0.0
    %531 = vmatpush1.msra.mxu0 %v372
    %532 = vmatprep.subr.mxu0 0.0
    %533 = vmatpush1.msra.mxu0 %v373
    %534 = vmatprep.subr.mxu0 0.0
    %535 = vmatpush1.msra.mxu0 %v374
    %536 = vmatprep.subr.mxu0 0.0
    %537 = vmatpush1.msra.mxu0 %v375
    %538 = vmatprep.subr.mxu0 0.0
    %539 = vmatpush1.msra.mxu0 0.0
    %540 = vmatprep.subr.mxu0 0.0
    %541 = vmatpush1.msra.mxu0 0.0
    %542 = vmatprep.subr.mxu0 0.0
    %543 = vmatpush1.msra.mxu0 0.0
    %544 = vmatprep.subr.mxu0 0.0
    %545 = vmatpush1.msra.mxu0 0.0
    %546 = vmatprep.subr.mxu0 0.0
    %547 = vmatpush1.msra.mxu0 0.0
    %548 = vmatprep.subr.mxu0 0.0
    %549 = vmatpush1.msra.mxu0 0.0
    %550 = vmatprep.subr.mxu0 0.0
    %551 = vmatpush1.msra.mxu0 0.0
    %552 = vmatprep.subr.mxu0 0.0
    %553 = vmatpush1.msra.mxu0 0.0
    %554 = vmatprep.subr.mxu0 0.0
    %555 = vmatpush1.msra.mxu0 0.0
    %556 = vmatprep.subr.mxu0 0.0
    %557 = vmatpush1.msra.mxu0 0.0
    %558 = vmatprep.subr.mxu0 0.0
    %559 = vmatpush1.msra.mxu0 0.0
    %560 = vmatprep.subr.mxu0 0.0
    %561 = vmatpush1.msra.mxu0 0.0
    %562 = vmatprep.subr.mxu0 0.0
    %563 = vmatpush1.msra.mxu0 0.0
    %564 = vmatprep.subr.mxu0 0.0
    %565 = vmatpush1.msra.mxu0 0.0
    %566 = vmatprep.subr.mxu0 0.0
    %567 = vmatpush1.msra.mxu0 0.0
    %568 = vmatprep.subr.mxu0 0.0
    %569 = vmatpush1.msra.mxu0 0.0
    %570 = vmatprep.subr.mxu0 0.0
    %571 = vmatpush1.msra.mxu0 0.0
    %572 = vmatprep.subr.mxu0 0.0
    %573 = vmatpush1.msra.mxu0 0.0
    %574 = vmatprep.subr.mxu0 0.0
    %575 = vmatpush1.msra.mxu0 0.0
    %576 = vmatprep.subr.mxu0 0.0
    %577 = vmatpush1.msra.mxu0 0.0
    %578 = vmatprep.subr.mxu0 0.0
    %579 = vmatpush1.msra.mxu0 0.0
    %580 = vmatprep.subr.mxu0 0.0
    %581 = vmatpush1.msra.mxu0 0.0
    %582 = vmatprep.subr.mxu0 0.0
    %583 = vmatpush1.msra.mxu0 0.0
    %584 = vmatprep.subr.mxu0 0.0
    %585 = vmatpush1.msra.mxu0 0.0
    %586 = vmatprep.subr.mxu0 0.0
    %587 = vmatpush1.msra.mxu0 0.0
    %588 = vmatprep.subr.mxu0 0.0
    %589 = vmatpush1.msra.mxu0 0.0
    %590 = vmatprep.subr.mxu0 0.0
    %591 = vmatpush1.msra.mxu0 0.0
    %592 = vmatprep.subr.mxu0 0.0
    %593 = vmatpush1.msra.mxu0 0.0
    %594 = vmatprep.mubr.f32.mxu0 0.0
    %595 = vmatmul.mubr.f32.gmra.mrb[0].mxu0 %v59
    %v596 = vpop.f32.mrb[0].mxu0
    %v597 = vadd.f32 0.0, %v596
    %v598 = vpop.f32.mrb[0].mxu0
    %599 = vmatprep.mubr.f32.mxu0 0.0
    %600 = vmatmul.mubr.f32.gmra.mrb[0].mxu0 %v62
    %v601 = vpop.f32.mrb[0].mxu0
    %v602 = vadd.f32 0.0, %v601
    %v603 = vpop.f32.mrb[0].mxu0
    %604 = vdwg.mxu0
    %605 = vmatprep.subr.mxu0 0.0
    %606 = vmatpush1.msra.mxu0 %v376
    %607 = vmatprep.subr.mxu0 0.0
    %608 = vmatpush1.msra.mxu0 %v377
    %609 = vmatprep.subr.mxu0 0.0
    %610 = vmatpush1.msra.mxu0 %v378
    %611 = vmatprep.subr.mxu0 0.0
    %612 = vmatpush1.msra.mxu0 %v379
    %613 = vmatprep.subr.mxu0 0.0
    %614 = vmatpush1.msra.mxu0 0.0
    %615 = vmatprep.subr.mxu0 0.0
    %616 = vmatpush1.msra.mxu0 0.0
    %617 = vmatprep.subr.mxu0 0.0
    %618 = vmatpush1.msra.mxu0 0.0
    %619 = vmatprep.subr.mxu0 0.0
    %620 = vmatpush1.msra.mxu0 0.0
    %621 = vmatprep.subr.mxu0 0.0
    %622 = vmatpush1.msra.mxu0 0.0
    %623 = vmatprep.subr.mxu0 0.0
    %624 = vmatpush1.msra.mxu0 0.0
    %625 = vmatprep.subr.mxu0 0.0
    %626 = vmatpush1.msra.mxu0 0.0
    %627 = vmatprep.subr.mxu0 0.0
    %628 = vmatpush1.msra.mxu0 0.0
    %629 = vmatprep.subr.mxu0 0.0
    %630 = vmatpush1.msra.mxu0 0.0
    %631 = vmatprep.subr.mxu0 0.0
    %632 = vmatpush1.msra.mxu0 0.0
    %633 = vmatprep.subr.mxu0 0.0
    %634 = vmatpush1.msra.mxu0 0.0
    %635 = vmatprep.subr.mxu0 0.0
    %636 = vmatpush1.msra.mxu0 0.0
    %637 = vmatprep.subr.mxu0 0.0
    %638 = vmatpush1.msra.mxu0 0.0
    %639 = vmatprep.subr.mxu0 0.0
    %640 = vmatpush1.msra.mxu0 0.0
    %641 = vmatprep.subr.mxu0 0.0
    %642 = vmatpush1.msra.mxu0 0.0
    %643 = vmatprep.subr.mxu0 0.0
    %644 = vmatpush1.msra.mxu0 0.0
    %645 = vmatprep.subr.mxu0 0.0
    %646 = vmatpush1.msra.mxu0 0.0
    %647 = vmatprep.subr.mxu0 0.0
    %648 = vmatpush1.msra.mxu0 0.0
    %649 = vmatprep.subr.mxu0 0.0
    %650 = vmatpush1.msra.mxu0 0.0
    %651 = vmatprep.subr.mxu0 0.0
    %652 = vmatpush1.msra.mxu0 0.0
    %653 = vmatprep.subr.mxu0 0.0
    %654 = vmatpush1.msra.mxu0 0.0
    %655 = vmatprep.subr.mxu0 0.0
    %656 = vmatpush1.msra.mxu0 0.0
    %657 = vmatprep.subr.mxu0 0.0
    %658 = vmatpush1.msra.mxu0 0.0
    %659 = vmatprep.subr.mxu0 0.0
    %660 = vmatpush1.msra.mxu0 0.0
    %661 = vmatprep.subr.mxu0 0.0
    %662 = vmatpush1.msra.mxu0 0.0
    %663 = vmatprep.subr.mxu0 0.0
    %664 = vmatpush1.msra.mxu0 0.0
    %665 = vmatprep.subr.mxu0 0.0
    %666 = vmatpush1.msra.mxu0 0.0
    %667 = vmatprep.subr.mxu0 0.0
    %668 = vmatpush1.msra.mxu0 0.0
    %669 = vmatprep.mubr.f32.mxu0 0.0
    %670 = vmatmul.mubr.f32.gmra.mrb[0].mxu0 %v59
    %v671 = vpop.f32.mrb[0].mxu0
    %v672 = vadd.f32 0.0, %v671
    %v673 = vpop.f32.mrb[0].mxu0
    %674 = vmatprep.mubr.f32.mxu0 0.0
    %675 = vmatmul.mubr.f32.gmra.mrb[0].mxu0 %v62
    %v676 = vpop.f32.mrb[0].mxu0
    %v677 = vadd.f32 0.0, %v676
    %v678 = vpop.f32.mrb[0].mxu0
    %679 = vdwg.mxu0
    %v680 = vld [vmem:[%s4] sm:$0xff]
    %v681 = vld [vmem:[%s4 + $0x8] sm:$0xff]
    %v682 = vld [vmem:[%s4 + $0x10] sm:$0xff]
    %v683 = vld [vmem:[%s4 + $0x18] sm:$0xff]
    %v684 = vld [vmem:[%s4 + $0x20] sm:$0xff]
    %v685 = vld [vmem:[%s4 + $0x28] sm:$0xff]
    %v686 = vld [vmem:[%s4 + $0x30] sm:$0xff]
    %v687 = vld [vmem:[%s4 + $0x38] sm:$0xff]
    %v688 = vld [vmem:[%s4 + $0x40] sm:$0xff]
    %v689 = vld [vmem:[%s4 + $0x48] sm:$0xff]
    %v690 = vld [vmem:[%s4 + $0x50] sm:$0xff]
    %v691 = vld [vmem:[%s4 + $0x58] sm:$0xff]
    %v692 = vld [vmem:[%s4 + $0x60] sm:$0xff]
    %v693 = vld [vmem:[%s4 + $0x68] sm:$0xff]
    %v694 = vld [vmem:[%s4 + $0x70] sm:$0xff]
    %v695 = vld [vmem:[%s4 + $0x78] sm:$0xff]
    %696 = vmatprep.subr.mxu0 0.0
    %697 = vmatpush1.msra.mxu0 %v680
    %698 = vmatprep.subr.mxu0 0.0
    %699 = vmatpush1.msra.mxu0 %v681
    %700 = vmatprep.subr.mxu0 0.0
    %701 = vmatpush1.msra.mxu0 %v682
    %702 = vmatprep.subr.mxu0 0.0
    %703 = vmatpush1.msra.mxu0 %v683
    %704 = vmatprep.subr.mxu0 0.0
    %705 = vmatpush1.msra.mxu0 0.0
    %706 = vmatprep.subr.mxu0 0.0
    %707 = vmatpush1.msra.mxu0 0.0
    %708 = vmatprep.subr.mxu0 0.0
    %709 = vmatpush1.msra.mxu0 0.0
    %710 = vmatprep.subr.mxu0 0.0
    %711 = vmatpush1.msra.mxu0 0.0
    %712 = vmatprep.subr.mxu0 0.0
    %713 = vmatpush1.msra.mxu0 0.0
    %714 = vmatprep.subr.mxu0 0.0
    %715 = vmatpush1.msra.mxu0 0.0
    %716 = vmatprep.subr.mxu0 0.0
    %717 = vmatpush1.msra.mxu0 0.0
    %718 = vmatprep.subr.mxu0 0.0
    %719 = vmatpush1.msra.mxu0 0.0
    %720 = vmatprep.subr.mxu0 0.0
    %721 = vmatpush1.msra.mxu0 0.0
    %722 = vmatprep.subr.mxu0 0.0
    %723 = vmatpush1.msra.mxu0 0.0
    %724 = vmatprep.subr.mxu0 0.0
    %725 = vmatpush1.msra.mxu0 0.0
    %726 = vmatprep.subr.mxu0 0.0
    %727 = vmatpush1.msra.mxu0 0.0
    %728 = vmatprep.subr.mxu0 0.0
    %729 = vmatpush1.msra.mxu0 0.0
    %730 = vmatprep.subr.mxu0 0.0
    %731 = vmatpush1.msra.mxu0 0.0
    %732 = vmatprep.subr.mxu0 0.0
    %733 = vmatpush1.msra.mxu0 0.0
    %734 = vmatprep.subr.mxu0 0.0
    %735 = vmatpush1.msra.mxu0 0.0
    %736 = vmatprep.subr.mxu0 0.0
    %737 = vmatpush1.msra.mxu0 0.0
    %738 = vmatprep.subr.mxu0 0.0
    %739 = vmatpush1.msra.mxu0 0.0
    %740 = vmatprep.subr.mxu0 0.0
    %741 = vmatpush1.msra.mxu0 0.0
    %742 = vmatprep.subr.mxu0 0.0
    %743 = vmatpush1.msra.mxu0 0.0
    %744 = vmatprep.subr.mxu0 0.0
    %745 = vmatpush1.msra.mxu0 0.0
    %746 = vmatprep.subr.mxu0 0.0
    %747 = vmatpush1.msra.mxu0 0.0
    %748 = vmatprep.subr.mxu0 0.0
    %749 = vmatpush1.msra.mxu0 0.0
    %750 = vmatprep.subr.mxu0 0.0
    %751 = vmatpush1.msra.mxu0 0.0
    %752 = vmatprep.subr.mxu0 0.0
    %753 = vmatpush1.msra.mxu0 0.0
    %754 = vmatprep.subr.mxu0 0.0
    %755 = vmatpush1.msra.mxu0 0.0
    %756 = vmatprep.subr.mxu0 0.0
    %757 = vmatpush1.msra.mxu0 0.0
    %758 = vmatprep.subr.mxu0 0.0
    %759 = vmatpush1.msra.mxu0 0.0
    %760 = vmatprep.mubr.f32.mxu0 0.0
    %761 = vmatmul.mubr.f32.gmra.mrb[0].mxu0 %v59
    %v762 = vpop.f32.mrb[0].mxu0
    %v763 = vadd.f32 0.0, %v762
    %v764 = vpop.f32.mrb[0].mxu0
    %765 = vmatprep.mubr.f32.mxu0 0.0
    %766 = vmatmul.mubr.f32.gmra.mrb[0].mxu0 %v62
    %v767 = vpop.f32.mrb[0].mxu0
    %v768 = vadd.f32 0.0, %v767
    %v769 = vpop.f32.mrb[0].mxu0
    %770 = vdwg.mxu0
    %771 = vmatprep.subr.mxu0 0.0
    %772 = vmatpush1.msra.mxu0 %v684
    %773 = vmatprep.subr.mxu0 0.0
    %774 = vmatpush1.msra.mxu0 %v685
    %775 = vmatprep.subr.mxu0 0.0
    %776 = vmatpush1.msra.mxu0 %v686
    %777 = vmatprep.subr.mxu0 0.0
    %778 = vmatpush1.msra.mxu0 %v687
    %779 = vmatprep.subr.mxu0 0.0
    %780 = vmatpush1.msra.mxu0 0.0
    %781 = vmatprep.subr.mxu0 0.0
    %782 = vmatpush1.msra.mxu0 0.0
    %783 = vmatprep.subr.mxu0 0.0
    %784 = vmatpush1.msra.mxu0 0.0
    %785 = vmatprep.subr.mxu0 0.0
    %786 = vmatpush1.msra.mxu0 0.0
    %787 = vmatprep.subr.mxu0 0.0
    %788 = vmatpush1.msra.mxu0 0.0
    %789 = vmatprep.subr.mxu0 0.0
    %790 = vmatpush1.msra.mxu0 0.0
    %791 = vmatprep.subr.mxu0 0.0
    %792 = vmatpush1.msra.mxu0 0.0
    %793 = vmatprep.subr.mxu0 0.0
    %794 = vmatpush1.msra.mxu0 0.0
    %795 = vmatprep.subr.mxu0 0.0
    %796 = vmatpush1.msra.mxu0 0.0
    %797 = vmatprep.subr.mxu0 0.0
    %798 = vmatpush1.msra.mxu0 0.0
    %799 = vmatprep.subr.mxu0 0.0
    %800 = vmatpush1.msra.mxu0 0.0
    %801 = vmatprep.subr.mxu0 0.0
    %802 = vmatpush1.msra.mxu0 0.0
    %803 = vmatprep.subr.mxu0 0.0
    %804 = vmatpush1.msra.mxu0 0.0
    %805 = vmatprep.subr.mxu0 0.0
    %806 = vmatpush1.msra.mxu0 0.0
    %807 = vmatprep.subr.mxu0 0.0
    %808 = vmatpush1.msra.mxu0 0.0
    %809 = vmatprep.subr.mxu0 0.0
    %810 = vmatpush1.msra.mxu0 0.0
    %811 = vmatprep.subr.mxu0 0.0
    %812 = vmatpush1.msra.mxu0 0.0
    %813 = vmatprep.subr.mxu0 0.0
    %814 = vmatpush1.msra.mxu0 0.0
    %815 = vmatprep.subr.mxu0 0.0
    %816 = vmatpush1.msra.mxu0 0.0
    %817 = vmatprep.subr.mxu0 0.0
    %818 = vmatpush1.msra.mxu0 0.0
    %819 = vmatprep.subr.mxu0 0.0
    %820 = vmatpush1.msra.mxu0 0.0
    %821 = vmatprep.subr.mxu0 0.0
    %822 = vmatpush1.msra.mxu0 0.0
    %823 = vmatprep.subr.mxu0 0.0
    %824 = vmatpush1.msra.mxu0 0.0
    %825 = vmatprep.subr.mxu0 0.0
    %826 = vmatpush1.msra.mxu0 0.0
    %827 = vmatprep.subr.mxu0 0.0
    %828 = vmatpush1.msra.mxu0 0.0
    %829 = vmatprep.subr.mxu0 0.0
    %830 = vmatpush1.msra.mxu0 0.0
    %831 = vmatprep.subr.mxu0 0.0
    %832 = vmatpush1.msra.mxu0 0.0
    %833 = vmatprep.subr.mxu0 0.0
    %834 = vmatpush1.msra.mxu0 0.0
    %835 = vmatprep.mubr.f32.mxu0 0.0
    %836 = vmatmul.mubr.f32.gmra.mrb[0].mxu0 %v59
    %v837 = vpop.f32.mrb[0].mxu0
    %v838 = vadd.f32 0.0, %v837
    %v839 = vpop.f32.mrb[0].mxu0
    %840 = vmatprep.mubr.f32.mxu0 0.0
    %841 = vmatmul.mubr.f32.gmra.mrb[0].mxu0 %v62
    %v842 = vpop.f32.mrb[0].mxu0
    %v843 = vadd.f32 0.0, %v842
    %v844 = vpop.f32.mrb[0].mxu0
    %845 = vdwg.mxu0
    %846 = vmatprep.subr.mxu0 0.0
    %847 = vmatpush1.msra.mxu0 %v688
    %848 = vmatprep.subr.mxu0 0.0
    %849 = vmatpush1.msra.mxu0 %v689
    %850 = vmatprep.subr.mxu0 0.0
    %851 = vmatpush1.msra.mxu0 %v690
    %852 = vmatprep.subr.mxu0 0.0
    %853 = vmatpush1.msra.mxu0 %v691
    %854 = vmatprep.subr.mxu0 0.0
    %855 = vmatpush1.msra.mxu0 0.0
    %856 = vmatprep.subr.mxu0 0.0
    %857 = vmatpush1.msra.mxu0 0.0
    %858 = vmatprep.subr.mxu0 0.0
    %859 = vmatpush1.msra.mxu0 0.0
    %860 = vmatprep.subr.mxu0 0.0
    %861 = vmatpush1.msra.mxu0 0.0
    %862 = vmatprep.subr.mxu0 0.0
    %863 = vmatpush1.msra.mxu0 0.0
    %864 = vmatprep.subr.mxu0 0.0
    %865 = vmatpush1.msra.mxu0 0.0
    %866 = vmatprep.subr.mxu0 0.0
    %867 = vmatpush1.msra.mxu0 0.0
    %868 = vmatprep.subr.mxu0 0.0
    %869 = vmatpush1.msra.mxu0 0.0
    %870 = vmatprep.subr.mxu0 0.0
    %871 = vmatpush1.msra.mxu0 0.0
    %872 = vmatprep.subr.mxu0 0.0
    %873 = vmatpush1.msra.mxu0 0.0
    %874 = vmatprep.subr.mxu0 0.0
    %875 = vmatpush1.msra.mxu0 0.0
    %876 = vmatprep.subr.mxu0 0.0
    %877 = vmatpush1.msra.mxu0 0.0
    %878 = vmatprep.subr.mxu0 0.0
    %879 = vmatpush1.msra.mxu0 0.0
    %880 = vmatprep.subr.mxu0 0.0
    %881 = vmatpush1.msra.mxu0 0.0
    %882 = vmatprep.subr.mxu0 0.0
    %883 = vmatpush1.msra.mxu0 0.0
    %884 = vmatprep.subr.mxu0 0.0
    %885 = vmatpush1.msra.mxu0 0.0
    %886 = vmatprep.subr.mxu0 0.0
    %887 = vmatpush1.msra.mxu0 0.0
    %888 = vmatprep.subr.mxu0 0.0
    %889 = vmatpush1.msra.mxu0 0.0
    %890 = vmatprep.subr.mxu0 0.0
    %891 = vmatpush1.msra.mxu0 0.0
    %892 = vmatprep.subr.mxu0 0.0
    %893 = vmatpush1.msra.mxu0 0.0
    %894 = vmatprep.subr.mxu0 0.0
    %895 = vmatpush1.msra.mxu0 0.0
    %896 = vmatprep.subr.mxu0 0.0
    %897 = vmatpush1.msra.mxu0 0.0
    %898 = vmatprep.subr.mxu0 0.0
    %899 = vmatpush1.msra.mxu0 0.0
    %900 = vmatprep.subr.mxu0 0.0
    %901 = vmatpush1.msra.mxu0 0.0
    %902 = vmatprep.subr.mxu0 0.0
    %903 = vmatpush1.msra.mxu0 0.0
    %904 = vmatprep.subr.mxu0 0.0
    %905 = vmatpush1.msra.mxu0 0.0
    %906 = vmatprep.subr.mxu0 0.0
    %907 = vmatpush1.msra.mxu0 0.0
    %908 = vmatprep.subr.mxu0 0.0
    %909 = vmatpush1.msra.mxu0 0.0
    %910 = vmatprep.mubr.f32.mxu0 0.0
    %911 = vmatmul.mubr.f32.gmra.mrb[0].mxu0 %v59
    %v912 = vpop.f32.mrb[0].mxu0
    %v913 = vadd.f32 0.0, %v912
    %v914 = vpop.f32.mrb[0].mxu0
    %915 = vmatprep.mubr.f32.mxu0 0.0
    %916 = vmatmul.mubr.f32.gmra.mrb[0].mxu0 %v62
    %v917 = vpop.f32.mrb[0].mxu0
    %v918 = vadd.f32 0.0, %v917
    %v919 = vpop.f32.mrb[0].mxu0
    %920 = vdwg.mxu0
    %921 = vmatprep.subr.mxu0 0.0
    %922 = vmatpush1.msra.mxu0 %v692
    %923 = vmatprep.subr.mxu0 0.0
    %924 = vmatpush1.msra.mxu0 %v693
    %925 = vmatprep.subr.mxu0 0.0
    %926 = vmatpush1.msra.mxu0 %v694
    %927 = vmatprep.subr.mxu0 0.0
    %928 = vmatpush1.msra.mxu0 %v695
    %929 = vmatprep.subr.mxu0 0.0
    %930 = vmatpush1.msra.mxu0 0.0
    %931 = vmatprep.subr.mxu0 0.0
    %932 = vmatpush1.msra.mxu0 0.0
    %933 = vmatprep.subr.mxu0 0.0
    %934 = vmatpush1.msra.mxu0 0.0
    %935 = vmatprep.subr.mxu0 0.0
    %936 = vmatpush1.msra.mxu0 0.0
    %937 = vmatprep.subr.mxu0 0.0
    %938 = vmatpush1.msra.mxu0 0.0
    %939 = vmatprep.subr.mxu0 0.0
    %940 = vmatpush1.msra.mxu0 0.0
    %941 = vmatprep.subr.mxu0 0.0
    %942 = vmatpush1.msra.mxu0 0.0
    %943 = vmatprep.subr.mxu0 0.0
    %944 = vmatpush1.msra.mxu0 0.0
    %945 = vmatprep.subr.mxu0 0.0
    %946 = vmatpush1.msra.mxu0 0.0
    %947 = vmatprep.subr.mxu0 0.0
    %948 = vmatpush1.msra.mxu0 0.0
    %949 = vmatprep.subr.mxu0 0.0
    %950 = vmatpush1.msra.mxu0 0.0
    %951 = vmatprep.subr.mxu0 0.0
    %952 = vmatpush1.msra.mxu0 0.0
    %953 = vmatprep.subr.mxu0 0.0
    %954 = vmatpush1.msra.mxu0 0.0
    %955 = vmatprep.subr.mxu0 0.0
    %956 = vmatpush1.msra.mxu0 0.0
    %957 = vmatprep.subr.mxu0 0.0
    %958 = vmatpush1.msra.mxu0 0.0
    %959 = vmatprep.subr.mxu0 0.0
    %960 = vmatpush1.msra.mxu0 0.0
    %961 = vmatprep.subr.mxu0 0.0
    %962 = vmatpush1.msra.mxu0 0.0
    %963 = vmatprep.subr.mxu0 0.0
    %964 = vmatpush1.msra.mxu0 0.0
    %965 = vmatprep.subr.mxu0 0.0
    %966 = vmatpush1.msra.mxu0 0.0
    %967 = vmatprep.subr.mxu0 0.0
    %968 = vmatpush1.msra.mxu0 0.0
    %969 = vmatprep.subr.mxu0 0.0
    %970 = vmatpush1.msra.mxu0 0.0
    %971 = vmatprep.subr.mxu0 0.0
    %972 = vmatpush1.msra.mxu0 0.0
    %973 = vmatprep.subr.mxu0 0.0
    %974 = vmatpush1.msra.mxu0 0.0
    %975 = vmatprep.subr.mxu0 0.0
    %976 = vmatpush1.msra.mxu0 0.0
    %977 = vmatprep.subr.mxu0 0.0
    %978 = vmatpush1.msra.mxu0 0.0
    %979 = vmatprep.subr.mxu0 0.0
    %980 = vmatpush1.msra.mxu0 0.0
    %981 = vmatprep.subr.mxu0 0.0
    %982 = vmatpush1.msra.mxu0 0.0
    %983 = vmatprep.subr.mxu0 0.0
    %984 = vmatpush1.msra.mxu0 0.0
    %985 = vmatprep.mubr.f32.mxu0 0.0
    %986 = vmatmul.mubr.f32.gmra.mrb[0].mxu0 %v59
    %v987 = vpop.f32.mrb[0].mxu0
    %v988 = vadd.f32 0.0, %v987
    %v989 = vpop.f32.mrb[0].mxu0
    %990 = vmatprep.mubr.f32.mxu0 0.0
    %991 = vmatmul.mubr.f32.gmra.mrb[0].mxu0 %v62
    %v992 = vpop.f32.mrb[0].mxu0
    %v993 = vadd.f32 0.0, %v992
    %v994 = vpop.f32.mrb[0].mxu0
    %995 = vdwg.mxu0
    %v996 = vld [vmem:[%s1] sm:$0xff]
    %v997 = vld [vmem:[%s1 + $0x8] sm:$0xff]
    %vm998 = vcmask 64512
    %v1000 = vsel %vm998, %v131, 0
    %v1003 = vsel %vm998, %v136, 0
    %v1006 = vsel %vm998, %v447, 0
    %v1009 = vsel %vm998, %v452, 0
    %1011 = vmatprep.subr.mxu0 0.0
    %1012 = vmatpush1.xpose.msra.mxu0 %v1006
    %1013 = vmatprep.subr.mxu0 0.0
    %1014 = vmatpush1.xpose.msra.mxu0 %v1009
    %1015 = vmatprep.subr.mxu0 0.0
    %1016 = vmatpush1.xpose.msra.mxu0 0.0
    %1017 = vmatprep.subr.mxu0 0.0
    %1018 = vmatpush1.xpose.msra.mxu0 0.0
    %1019 = vmatprep.subr.mxu0 0.0
    %1020 = vmatpush1.xpose.msra.mxu0 0.0
    %1021 = vmatprep.subr.mxu0 0.0
    %1022 = vmatpush1.xpose.msra.mxu0 0.0
    %1023 = vmatprep.subr.mxu0 0.0
    %1024 = vmatpush1.xpose.msra.mxu0 0.0
    %1025 = vmatprep.subr.mxu0 0.0
    %1026 = vmatpush1.xpose.msra.mxu0 0.0
    %1027 = vmatprep.subr.mxu0 0.0
    %1028 = vmatpush1.xpose.msra.mxu0 0.0
    %1029 = vmatprep.subr.mxu0 0.0
    %1030 = vmatpush1.xpose.msra.mxu0 0.0
    %1031 = vmatprep.subr.mxu0 0.0
    %1032 = vmatpush1.xpose.msra.mxu0 0.0
    %1033 = vmatprep.subr.mxu0 0.0
    %1034 = vmatpush1.xpose.msra.mxu0 0.0
    %1035 = vmatprep.subr.mxu0 0.0
    %1036 = vmatpush1.xpose.msra.mxu0 0.0
    %1037 = vmatprep.subr.mxu0 0.0
    %1038 = vmatpush1.xpose.msra.mxu0 0.0
    %1039 = vmatprep.subr.mxu0 0.0
    %1040 = vmatpush1.xpose.msra.mxu0 0.0
    %1041 = vmatprep.subr.mxu0 0.0
    %1042 = vmatpush1.xpose.msra.mxu0 0.0
    %1043 = vmatprep.subr.mxu0 0.0
    %1044 = vmatpush1.xpose.msra.mxu0 0.0
    %1045 = vmatprep.subr.mxu0 0.0
    %1046 = vmatpush1.xpose.msra.mxu0 0.0
    %1047 = vmatprep.subr.mxu0 0.0
    %1048 = vmatpush1.xpose.msra.mxu0 0.0
    %1049 = vmatprep.subr.mxu0 0.0
    %1050 = vmatpush1.xpose.msra.mxu0 0.0
    %1051 = vmatprep.subr.mxu0 0.0
    %1052 = vmatpush1.xpose.msra.mxu0 0.0
    %1053 = vmatprep.subr.mxu0 0.0
    %1054 = vmatpush1.xpose.msra.mxu0 0.0
    %1055 = vmatprep.subr.mxu0 0.0
    %1056 = vmatpush1.xpose.msra.mxu0 0.0
    %1057 = vmatprep.subr.mxu0 0.0
    %1058 = vmatpush1.xpose.msra.mxu0 0.0
    %1059 = vmatprep.subr.mxu0 0.0
    %1060 = vmatpush1.xpose.msra.mxu0 0.0
    %1061 = vmatprep.subr.mxu0 0.0
    %1062 = vmatpush1.xpose.msra.mxu0 0.0
    %1063 = vmatprep.subr.mxu0 0.0
    %1064 = vmatpush1.xpose.msra.mxu0 0.0
    %1065 = vmatprep.subr.mxu0 0.0
    %1066 = vmatpush1.xpose.msra.mxu0 0.0
    %1067 = vmatprep.subr.mxu0 0.0
    %1068 = vmatpush1.xpose.msra.mxu0 0.0
    %1069 = vmatprep.subr.mxu0 0.0
    %1070 = vmatpush1.xpose.msra.mxu0 0.0
    %1071 = vmatprep.subr.mxu0 0.0
    %1072 = vmatpush1.xpose.msra.mxu0 0.0
    %1073 = vmatprep.subr.mxu0 0.0
    %1074 = vmatpush1.xpose.msra.mxu0 0.0
    %1075 = vmatprep.mubr.f32.mxu0 0.0
    %1076 = vmatmul.mubr.f32.gmra.mrb[0].mxu0 %v1000
    %v1077 = vpop.f32.mrb[0].mxu0
    %v1078 = vadd.f32 %v996, %v1077
    %v1079 = vpop.f32.mrb[0].mxu0
    %1080 = vmatprep.mubr.f32.mxu0 0.0
    %1081 = vmatmul.mubr.f32.gmra.mrb[0].mxu0 %v1003
    %v1082 = vpop.f32.mrb[0].mxu0
    %v1083 = vadd.f32 %v997, %v1082
    %v1084 = vpop.f32.mrb[0].mxu0
    %1085 = vdwg.mxu0
    %v1087 = vsel %vm998, %v206, 0
    %v1090 = vsel %vm998, %v211, 0
    %v1093 = vsel %vm998, %v522, 0
    %v1096 = vsel %vm998, %v527, 0
    %1098 = vmatprep.subr.mxu0 0.0
    %1099 = vmatpush1.xpose.msra.mxu0 %v1093
    %1100 = vmatprep.subr.mxu0 0.0
    %1101 = vmatpush1.xpose.msra.mxu0 %v1096
    %1102 = vmatprep.subr.mxu0 0.0
    %1103 = vmatpush1.xpose.msra.mxu0 0.0
    %1104 = vmatprep.subr.mxu0 0.0
    %1105 = vmatpush1.xpose.msra.mxu0 0.0
    %1106 = vmatprep.subr.mxu0 0.0
    %1107 = vmatpush1.xpose.msra.mxu0 0.0
    %1108 = vmatprep.subr.mxu0 0.0
    %1109 = vmatpush1.xpose.msra.mxu0 0.0
    %1110 = vmatprep.subr.mxu0 0.0
    %1111 = vmatpush1.xpose.msra.mxu0 0.0
    %1112 = vmatprep.subr.mxu0 0.0
    %1113 = vmatpush1.xpose.msra.mxu0 0.0
    %1114 = vmatprep.subr.mxu0 0.0
    %1115 = vmatpush1.xpose.msra.mxu0 0.0
    %1116 = vmatprep.subr.mxu0 0.0
    %1117 = vmatpush1.xpose.msra.mxu0 0.0
    %1118 = vmatprep.subr.mxu0 0.0
    %1119 = vmatpush1.xpose.msra.mxu0 0.0
    %1120 = vmatprep.subr.mxu0 0.0
    %1121 = vmatpush1.xpose.msra.mxu0 0.0
    %1122 = vmatprep.subr.mxu0 0.0
    %1123 = vmatpush1.xpose.msra.mxu0 0.0
    %1124 = vmatprep.subr.mxu0 0.0
    %1125 = vmatpush1.xpose.msra.mxu0 0.0
    %1126 = vmatprep.subr.mxu0 0.0
    %1127 = vmatpush1.xpose.msra.mxu0 0.0
    %1128 = vmatprep.subr.mxu0 0.0
    %1129 = vmatpush1.xpose.msra.mxu0 0.0
    %1130 = vmatprep.subr.mxu0 0.0
    %1131 = vmatpush1.xpose.msra.mxu0 0.0
    %1132 = vmatprep.subr.mxu0 0.0
    %1133 = vmatpush1.xpose.msra.mxu0 0.0
    %1134 = vmatprep.subr.mxu0 0.0
    %1135 = vmatpush1.xpose.msra.mxu0 0.0
    %1136 = vmatprep.subr.mxu0 0.0
    %1137 = vmatpush1.xpose.msra.mxu0 0.0
    %1138 = vmatprep.subr.mxu0 0.0
    %1139 = vmatpush1.xpose.msra.mxu0 0.0
    %1140 = vmatprep.subr.mxu0 0.0
    %1141 = vmatpush1.xpose.msra.mxu0 0.0
    %1142 = vmatprep.subr.mxu0 0.0
    %1143 = vmatpush1.xpose.msra.mxu0 0.0
    %1144 = vmatprep.subr.mxu0 0.0
    %1145 = vmatpush1.xpose.msra.mxu0 0.0
    %1146 = vmatprep.subr.mxu0 0.0
    %1147 = vmatpush1.xpose.msra.mxu0 0.0
    %1148 = vmatprep.subr.mxu0 0.0
    %1149 = vmatpush1.xpose.msra.mxu0 0.0
    %1150 = vmatprep.subr.mxu0 0.0
    %1151 = vmatpush1.xpose.msra.mxu0 0.0
    %1152 = vmatprep.subr.mxu0 0.0
    %1153 = vmatpush1.xpose.msra.mxu0 0.0
    %1154 = vmatprep.subr.mxu0 0.0
    %1155 = vmatpush1.xpose.msra.mxu0 0.0
    %1156 = vmatprep.subr.mxu0 0.0
    %1157 = vmatpush1.xpose.msra.mxu0 0.0
    %1158 = vmatprep.subr.mxu0 0.0
    %1159 = vmatpush1.xpose.msra.mxu0 0.0
    %1160 = vmatprep.subr.mxu0 0.0
    %1161 = vmatpush1.xpose.msra.mxu0 0.0
    %1162 = vmatprep.mubr.f32.mxu0 0.0
    %1163 = vmatmul.mubr.f32.gmra.mrb[0].mxu0 %v1087
    %v1164 = vpop.f32.mrb[0].mxu0
    %v1165 = vadd.f32 %v996, %v1164
    %v1166 = vpop.f32.mrb[0].mxu0
    %1167 = vmatprep.mubr.f32.mxu0 0.0
    %1168 = vmatmul.mubr.f32.gmra.mrb[0].mxu0 %v1090
    %v1169 = vpop.f32.mrb[0].mxu0
    %v1170 = vadd.f32 %v997, %v1169
    %v1171 = vpop.f32.mrb[0].mxu0
    %1172 = vdwg.mxu0
    %v1174 = vsel %vm998, %v281, 0
    %v1177 = vsel %vm998, %v286, 0
    %v1180 = vsel %vm998, %v597, 0
    %v1183 = vsel %vm998, %v602, 0
    %1185 = vmatprep.subr.mxu0 0.0
    %1186 = vmatpush1.xpose.msra.mxu0 %v1180
    %1187 = vmatprep.subr.mxu0 0.0
    %1188 = vmatpush1.xpose.msra.mxu0 %v1183
    %1189 = vmatprep.subr.mxu0 0.0
    %1190 = vmatpush1.xpose.msra.mxu0 0.0
    %1191 = vmatprep.subr.mxu0 0.0
    %1192 = vmatpush1.xpose.msra.mxu0 0.0
    %1193 = vmatprep.subr.mxu0 0.0
    %1194 = vmatpush1.xpose.msra.mxu0 0.0
    %1195 = vmatprep.subr.mxu0 0.0
    %1196 = vmatpush1.xpose.msra.mxu0 0.0
    %1197 = vmatprep.subr.mxu0 0.0
    %1198 = vmatpush1.xpose.msra.mxu0 0.0
    %1199 = vmatprep.subr.mxu0 0.0
    %1200 = vmatpush1.xpose.msra.mxu0 0.0
    %1201 = vmatprep.subr.mxu0 0.0
    %1202 = vmatpush1.xpose.msra.mxu0 0.0
    %1203 = vmatprep.subr.mxu0 0.0
    %1204 = vmatpush1.xpose.msra.mxu0 0.0
    %1205 = vmatprep.subr.mxu0 0.0
    %1206 = vmatpush1.xpose.msra.mxu0 0.0
    %1207 = vmatprep.subr.mxu0 0.0
    %1208 = vmatpush1.xpose.msra.mxu0 0.0
    %1209 = vmatprep.subr.mxu0 0.0
    %1210 = vmatpush1.xpose.msra.mxu0 0.0
    %1211 = vmatprep.subr.mxu0 0.0
    %1212 = vmatpush1.xpose.msra.mxu0 0.0
    %1213 = vmatprep.subr.mxu0 0.0
    %1214 = vmatpush1.xpose.msra.mxu0 0.0
    %1215 = vmatprep.subr.mxu0 0.0
    %1216 = vmatpush1.xpose.msra.mxu0 0.0
    %1217 = vmatprep.subr.mxu0 0.0
    %1218 = vmatpush1.xpose.msra.mxu0 0.0
    %1219 = vmatprep.subr.mxu0 0.0
    %1220 = vmatpush1.xpose.msra.mxu0 0.0
    %1221 = vmatprep.subr.mxu0 0.0
    %1222 = vmatpush1.xpose.msra.mxu0 0.0
    %1223 = vmatprep.subr.mxu0 0.0
    %1224 = vmatpush1.xpose.msra.mxu0 0.0
    %1225 = vmatprep.subr.mxu0 0.0
    %1226 = vmatpush1.xpose.msra.mxu0 0.0
    %1227 = vmatprep.subr.mxu0 0.0
    %1228 = vmatpush1.xpose.msra.mxu0 0.0
    %1229 = vmatprep.subr.mxu0 0.0
    %1230 = vmatpush1.xpose.msra.mxu0 0.0
    %1231 = vmatprep.subr.mxu0 0.0
    %1232 = vmatpush1.xpose.msra.mxu0 0.0
    %1233 = vmatprep.subr.mxu0 0.0
    %1234 = vmatpush1.xpose.msra.mxu0 0.0
    %1235 = vmatprep.subr.mxu0 0.0
    %1236 = vmatpush1.xpose.msra.mxu0 0.0
    %1237 = vmatprep.subr.mxu0 0.0
    %1238 = vmatpush1.xpose.msra.mxu0 0.0
    %1239 = vmatprep.subr.mxu0 0.0
    %1240 = vmatpush1.xpose.msra.mxu0 0.0
    %1241 = vmatprep.subr.mxu0 0.0
    %1242 = vmatpush1.xpose.msra.mxu0 0.0
    %1243 = vmatprep.subr.mxu0 0.0
    %1244 = vmatpush1.xpose.msra.mxu0 0.0
    %1245 = vmatprep.subr.mxu0 0.0
    %1246 = vmatpush1.xpose.msra.mxu0 0.0
    %1247 = vmatprep.subr.mxu0 0.0
    %1248 = vmatpush1.xpose.msra.mxu0 0.0
    %1249 = vmatprep.mubr.f32.mxu0 0.0
    %1250 = vmatmul.mubr.f32.gmra.mrb[0].mxu0 %v1174
    %v1251 = vpop.f32.mrb[0].mxu0
    %v1252 = vadd.f32 %v996, %v1251
    %v1253 = vpop.f32.mrb[0].mxu0
    %1254 = vmatprep.mubr.f32.mxu0 0.0
    %1255 = vmatmul.mubr.f32.gmra.mrb[0].mxu0 %v1177
    %v1256 = vpop.f32.mrb[0].mxu0
    %v1257 = vadd.f32 %v997, %v1256
    %v1258 = vpop.f32.mrb[0].mxu0
    %1259 = vdwg.mxu0
    %v1261 = vsel %vm998, %v356, 0
    %v1264 = vsel %vm998, %v361, 0
    %v1267 = vsel %vm998, %v672, 0
    %v1270 = vsel %vm998, %v677, 0
    %1272 = vmatprep.subr.mxu0 0.0
    %1273 = vmatpush1.xpose.msra.mxu0 %v1267
    %1274 = vmatprep.subr.mxu0 0.0
    %1275 = vmatpush1.xpose.msra.mxu0 %v1270
    %1276 = vmatprep.subr.mxu0 0.0
    %1277 = vmatpush1.xpose.msra.mxu0 0.0
    %1278 = vmatprep.subr.mxu0 0.0
    %1279 = vmatpush1.xpose.msra.mxu0 0.0
    %1280 = vmatprep.subr.mxu0 0.0
    %1281 = vmatpush1.xpose.msra.mxu0 0.0
    %1282 = vmatprep.subr.mxu0 0.0
    %1283 = vmatpush1.xpose.msra.mxu0 0.0
    %1284 = vmatprep.subr.mxu0 0.0
    %1285 = vmatpush1.xpose.msra.mxu0 0.0
    %1286 = vmatprep.subr.mxu0 0.0
    %1287 = vmatpush1.xpose.msra.mxu0 0.0
    %1288 = vmatprep.subr.mxu0 0.0
    %1289 = vmatpush1.xpose.msra.mxu0 0.0
    %1290 = vmatprep.subr.mxu0 0.0
    %1291 = vmatpush1.xpose.msra.mxu0 0.0
    %1292 = vmatprep.subr.mxu0 0.0
    %1293 = vmatpush1.xpose.msra.mxu0 0.0
    %1294 = vmatprep.subr.mxu0 0.0
    %1295 = vmatpush1.xpose.msra.mxu0 0.0
    %1296 = vmatprep.subr.mxu0 0.0
    %1297 = vmatpush1.xpose.msra.mxu0 0.0
    %1298 = vmatprep.subr.mxu0 0.0
    %1299 = vmatpush1.xpose.msra.mxu0 0.0
    %1300 = vmatprep.subr.mxu0 0.0
    %1301 = vmatpush1.xpose.msra.mxu0 0.0
    %1302 = vmatprep.subr.mxu0 0.0
    %1303 = vmatpush1.xpose.msra.mxu0 0.0
    %1304 = vmatprep.subr.mxu0 0.0
    %1305 = vmatpush1.xpose.msra.mxu0 0.0
    %1306 = vmatprep.subr.mxu0 0.0
    %1307 = vmatpush1.xpose.msra.mxu0 0.0
    %1308 = vmatprep.subr.mxu0 0.0
    %1309 = vmatpush1.xpose.msra.mxu0 0.0
    %1310 = vmatprep.subr.mxu0 0.0
    %1311 = vmatpush1.xpose.msra.mxu0 0.0
    %1312 = vmatprep.subr.mxu0 0.0
    %1313 = vmatpush1.xpose.msra.mxu0 0.0
    %1314 = vmatprep.subr.mxu0 0.0
    %1315 = vmatpush1.xpose.msra.mxu0 0.0
    %1316 = vmatprep.subr.mxu0 0.0
    %1317 = vmatpush1.xpose.msra.mxu0 0.0
    %1318 = vmatprep.subr.mxu0 0.0
    %1319 = vmatpush1.xpose.msra.mxu0 0.0
    %1320 = vmatprep.subr.mxu0 0.0
    %1321 = vmatpush1.xpose.msra.mxu0 0.0
    %1322 = vmatprep.subr.mxu0 0.0
    %1323 = vmatpush1.xpose.msra.mxu0 0.0
    %1324 = vmatprep.subr.mxu0 0.0
    %1325 = vmatpush1.xpose.msra.mxu0 0.0
    %1326 = vmatprep.subr.mxu0 0.0
    %1327 = vmatpush1.xpose.msra.mxu0 0.0
    %1328 = vmatprep.subr.mxu0 0.0
    %1329 = vmatpush1.xpose.msra.mxu0 0.0
    %1330 = vmatprep.subr.mxu0 0.0
    %1331 = vmatpush1.xpose.msra.mxu0 0.0
    %1332 = vmatprep.subr.mxu0 0.0
    %1333 = vmatpush1.xpose.msra.mxu0 0.0
    %1334 = vmatprep.subr.mxu0 0.0
    %1335 = vmatpush1.xpose.msra.mxu0 0.0
    %1336 = vmatprep.mubr.f32.mxu0 0.0
    %1337 = vmatmul.mubr.f32.gmra.mrb[0].mxu0 %v1261
    %v1338 = vpop.f32.mrb[0].mxu0
    %v1339 = vadd.f32 %v996, %v1338
    %v1340 = vpop.f32.mrb[0].mxu0
    %1341 = vmatprep.mubr.f32.mxu0 0.0
    %1342 = vmatmul.mubr.f32.gmra.mrb[0].mxu0 %v1264
    %v1343 = vpop.f32.mrb[0].mxu0
    %v1344 = vadd.f32 %v997, %v1343
    %v1345 = vpop.f32.mrb[0].mxu0
    %1346 = vdwg.mxu0
    %vm1347 = vcmask 130048
    %v1348 = vsel %vm1347, %v1078, -inf
    %1349 = vmax.xlane.f32.xlu0 %v1348
    %v1350 = vpop.xlane.xlu0 %1349
    %v1351 = vsel %vm1347, %v1083, -inf
    %1352 = vmax.xlane.f32.xlu0 %v1351
    %v1353 = vpop.xlane.xlu0 %1352
    %v1354 = vsel %vm1347, %v1165, -inf
    %1355 = vmax.xlane.f32.xlu0 %v1354
    %v1356 = vpop.xlane.xlu0 %1355
    %v1357 = vsel %vm1347, %v1170, -inf
    %1358 = vmax.xlane.f32.xlu0 %v1357
    %v1359 = vpop.xlane.xlu0 %1358
    %v1360 = vsel %vm1347, %v1252, -inf
    %1361 = vmax.xlane.f32.xlu0 %v1360
    %v1362 = vpop.xlane.xlu0 %1361
    %v1363 = vsel %vm1347, %v1257, -inf
    %1364 = vmax.xlane.f32.xlu0 %v1363
    %v1365 = vpop.xlane.xlu0 %1364
    %v1366 = vsel %vm1347, %v1339, -inf
    %1367 = vmax.xlane.f32.xlu0 %v1366
    %v1368 = vpop.xlane.xlu0 %1367
    %v1369 = vsel %vm1347, %v1344, -inf
    %1370 = vmax.xlane.f32.xlu0 %v1369
    %v1371 = vpop.xlane.xlu0 %1370
    %v1372 = vsub.f32 %v1078, %v1350
    %v1373 = vsub.f32 %v1083, %v1353
    %v1374 = vsub.f32 %v1165, %v1356
    %v1375 = vsub.f32 %v1170, %v1359
    %v1376 = vsub.f32 %v1252, %v1362
    %v1377 = vsub.f32 %v1257, %v1365
    %v1378 = vsub.f32 %v1339, %v1368
    %v1379 = vsub.f32 %v1344, %v1371
    %v1380 = vmul.f32 %v1372, 1.442695
    %v1381 = vpow.pop %v1380
    %v1382 = vmul.f32 %v1373, 1.442695
    %v1383 = vpow.pop %v1382
    %v1384 = vmul.f32 %v1374, 1.442695
    %v1385 = vpow.pop %v1384
    %v1386 = vmul.f32 %v1375, 1.442695
    %v1387 = vpow.pop %v1386
    %v1388 = vmul.f32 %v1376, 1.442695
    %v1389 = vpow.pop %v1388
    %v1390 = vmul.f32 %v1377, 1.442695
    %v1391 = vpow.pop %v1390
    %v1392 = vmul.f32 %v1378, 1.442695
    %v1393 = vpow.pop %v1392
    %v1394 = vmul.f32 %v1379, 1.442695
    %v1395 = vpow.pop %v1394
    %v1396 = vsel %vm1347, %v1381, 0.0
    %1397 = vadd.xlane.f32.xlu0 %v1396
    %v1398 = vpop.xlane.xlu0 %1397
    %v1399 = vsel %vm1347, %v1383, 0.0
    %1400 = vadd.xlane.f32.xlu0 %v1399
    %v1401 = vpop.xlane.xlu0 %1400
    %v1402 = vsel %vm1347, %v1385, 0.0
    %1403 = vadd.xlane.f32.xlu0 %v1402
    %v1404 = vpop.xlane.xlu0 %1403
    %v1405 = vsel %vm1347, %v1387, 0.0
    %1406 = vadd.xlane.f32.xlu0 %v1405
    %v1407 = vpop.xlane.xlu0 %1406
    %v1408 = vsel %vm1347, %v1389, 0.0
    %1409 = vadd.xlane.f32.xlu0 %v1408
    %v1410 = vpop.xlane.xlu0 %1409
    %v1411 = vsel %vm1347, %v1391, 0.0
    %1412 = vadd.xlane.f32.xlu0 %v1411
    %v1413 = vpop.xlane.xlu0 %1412
    %v1414 = vsel %vm1347, %v1393, 0.0
    %1415 = vadd.xlane.f32.xlu0 %v1414
    %v1416 = vpop.xlane.xlu0 %1415
    %v1417 = vsel %vm1347, %v1395, 0.0
    %1418 = vadd.xlane.f32.xlu0 %v1417
    %v1419 = vpop.xlane.xlu0 %1418
    %v1420 = vrcp.pop %v1398
    %v1421 = vmul.f32 %v1381, %v1420
    %v1422 = vrcp.pop %v1401
    %v1423 = vmul.f32 %v1383, %v1422
    %v1424 = vrcp.pop %v1404
    %v1425 = vmul.f32 %v1385, %v1424
    %v1426 = vrcp.pop %v1407
    %v1427 = vmul.f32 %v1387, %v1426
    %v1428 = vrcp.pop %v1410
    %v1429 = vmul.f32 %v1389, %v1428
    %v1430 = vrcp.pop %v1413
    %v1431 = vmul.f32 %v1391, %v1430
    %v1432 = vrcp.pop %v1416
    %v1433 = vmul.f32 %v1393, %v1432
    %v1434 = vrcp.pop %v1419
    %v1435 = vmul.f32 %v1395, %v1434
    %v1437 = vsel %vm1347, %v1421, 0
    %v1440 = vsel %vm1347, %v1423, 0
    %1442 = vmatprep.subr.mxu0 0.0
    %1443 = vmatpush1.msra.mxu0 %v763
    %1444 = vmatprep.subr.mxu0 0.0
    %1445 = vmatpush1.msra.mxu0 %v768
    %1446 = vmatprep.subr.mxu0 0.0
    %1447 = vmatpush1.msra.mxu0 0.0
    %1448 = vmatprep.subr.mxu0 0.0
    %1449 = vmatpush1.msra.mxu0 0.0
    %1450 = vmatprep.subr.mxu0 0.0
    %1451 = vmatpush1.msra.mxu0 0.0
    %1452 = vmatprep.subr.mxu0 0.0
    %1453 = vmatpush1.msra.mxu0 0.0
    %1454 = vmatprep.subr.mxu0 0.0
    %1455 = vmatpush1.msra.mxu0 0.0
    %1456 = vmatprep.subr.mxu0 0.0
    %1457 = vmatpush1.msra.mxu0 0.0
    %1458 = vmatprep.subr.mxu0 0.0
    %1459 = vmatpush1.msra.mxu0 0.0
    %1460 = vmatprep.subr.mxu0 0.0
    %1461 = vmatpush1.msra.mxu0 0.0
    %1462 = vmatprep.subr.mxu0 0.0
    %1463 = vmatpush1.msra.mxu0 0.0
    %1464 = vmatprep.subr.mxu0 0.0
    %1465 = vmatpush1.msra.mxu0 0.0
    %1466 = vmatprep.subr.mxu0 0.0
    %1467 = vmatpush1.msra.mxu0 0.0
    %1468 = vmatprep.subr.mxu0 0.0
    %1469 = vmatpush1.msra.mxu0 0.0
    %1470 = vmatprep.subr.mxu0 0.0
    %1471 = vmatpush1.msra.mxu0 0.0
    %1472 = vmatprep.subr.mxu0 0.0
    %1473 = vmatpush1.msra.mxu0 0.0
    %1474 = vmatprep.subr.mxu0 0.0
    %1475 = vmatpush1.msra.mxu0 0.0
    %1476 = vmatprep.subr.mxu0 0.0
    %1477 = vmatpush1.msra.mxu0 0.0
    %1478 = vmatprep.subr.mxu0 0.0
    %1479 = vmatpush1.msra.mxu0 0.0
    %1480 = vmatprep.subr.mxu0 0.0
    %1481 = vmatpush1.msra.mxu0 0.0
    %1482 = vmatprep.subr.mxu0 0.0
    %1483 = vmatpush1.msra.mxu0 0.0
    %1484 = vmatprep.subr.mxu0 0.0
    %1485 = vmatpush1.msra.mxu0 0.0
    %1486 = vmatprep.subr.mxu0 0.0
    %1487 = vmatpush1.msra.mxu0 0.0
    %1488 = vmatprep.subr.mxu0 0.0
    %1489 = vmatpush1.msra.mxu0 0.0
    %1490 = vmatprep.subr.mxu0 0.0
    %1491 = vmatpush1.msra.mxu0 0.0
    %1492 = vmatprep.subr.mxu0 0.0
    %1493 = vmatpush1.msra.mxu0 0.0
    %1494 = vmatprep.subr.mxu0 0.0
    %1495 = vmatpush1.msra.mxu0 0.0
    %1496 = vmatprep.subr.mxu0 0.0
    %1497 = vmatpush1.msra.mxu0 0.0
    %1498 = vmatprep.subr.mxu0 0.0
    %1499 = vmatpush1.msra.mxu0 0.0
    %1500 = vmatprep.subr.mxu0 0.0
    %1501 = vmatpush1.msra.mxu0 0.0
    %1502 = vmatprep.subr.mxu0 0.0
    %1503 = vmatpush1.msra.mxu0 0.0
    %1504 = vmatprep.subr.mxu0 0.0
    %1505 = vmatpush1.msra.mxu0 0.0
    %1506 = vmatprep.mubr.f32.mxu0 0.0
    %1507 = vmatmul.mubr.f32.gmra.mrb[0].mxu0 %v1437
    %v1508 = vpop.f32.mrb[0].mxu0
    %v1509 = vadd.f32 0.0, %v1508
    %v1510 = vpop.f32.mrb[0].mxu0
    %1511 = vmatprep.mubr.f32.mxu0 0.0
    %1512 = vmatmul.mubr.f32.gmra.mrb[0].mxu0 %v1440
    %v1513 = vpop.f32.mrb[0].mxu0
    %v1514 = vadd.f32 0.0, %v1513
    %v1515 = vpop.f32.mrb[0].mxu0
    %1516 = vdwg.mxu0
    %v1518 = vsel %vm1347, %v1425, 0
    %v1521 = vsel %vm1347, %v1427, 0
    %1523 = vmatprep.subr.mxu0 0.0
    %1524 = vmatpush1.msra.mxu0 %v838
    %1525 = vmatprep.subr.mxu0 0.0
    %1526 = vmatpush1.msra.mxu0 %v843
    %1527 = vmatprep.subr.mxu0 0.0
    %1528 = vmatpush1.msra.mxu0 0.0
    %1529 = vmatprep.subr.mxu0 0.0
    %1530 = vmatpush1.msra.mxu0 0.0
    %1531 = vmatprep.subr.mxu0 0.0
    %1532 = vmatpush1.msra.mxu0 0.0
    %1533 = vmatprep.subr.mxu0 0.0
    %1534 = vmatpush1.msra.mxu0 0.0
    %1535 = vmatprep.subr.mxu0 0.0
    %1536 = vmatpush1.msra.mxu0 0.0
    %1537 = vmatprep.subr.mxu0 0.0
    %1538 = vmatpush1.msra.mxu0 0.0
    %1539 = vmatprep.subr.mxu0 0.0
    %1540 = vmatpush1.msra.mxu0 0.0
    %1541 = vmatprep.subr.mxu0 0.0
    %1542 = vmatpush1.msra.mxu0 0.0
    %1543 = vmatprep.subr.mxu0 0.0
    %1544 = vmatpush1.msra.mxu0 0.0
    %1545 = vmatprep.subr.mxu0 0.0
    %1546 = vmatpush1.msra.mxu0 0.0
    %1547 = vmatprep.subr.mxu0 0.0
    %1548 = vmatpush1.msra.mxu0 0.0
    %1549 = vmatprep.subr.mxu0 0.0
    %1550 = vmatpush1.msra.mxu0 0.0
    %1551 = vmatprep.subr.mxu0 0.0
    %1552 = vmatpush1.msra.mxu0 0.0
    %1553 = vmatprep.subr.mxu0 0.0
    %1554 = vmatpush1.msra.mxu0 0.0
    %1555 = vmatprep.subr.mxu0 0.0
    %1556 = vmatpush1.msra.mxu0 0.0
    %1557 = vmatprep.subr.mxu0 0.0
    %1558 = vmatpush1.msra.mxu0 0.0
    %1559 = vmatprep.subr.mxu0 0.0
    %1560 = vmatpush1.msra.mxu0 0.0
    %1561 = vmatprep.subr.mxu0 0.0
    %1562 = vmatpush1.msra.mxu0 0.0
    %1563 = vmatprep.subr.mxu0 0.0
    %1564 = vmatpush1.msra.mxu0 0.0
    %1565 = vmatprep.subr.mxu0 0.0
    %1566 = vmatpush1.msra.mxu0 0.0
    %1567 = vmatprep.subr.mxu0 0.0
    %1568 = vmatpush1.msra.mxu0 0.0
    %1569 = vmatprep.subr.mxu0 0.0
    %1570 = vmatpush1.msra.mxu0 0.0
    %1571 = vmatprep.subr.mxu0 0.0
    %1572 = vmatpush1.msra.mxu0 0.0
    %1573 = vmatprep.subr.mxu0 0.0
    %1574 = vmatpush1.msra.mxu0 0.0
    %1575 = vmatprep.subr.mxu0 0.0
    %1576 = vmatpush1.msra.mxu0 0.0
    %1577 = vmatprep.subr.mxu0 0.0
    %1578 = vmatpush1.msra.mxu0 0.0
    %1579 = vmatprep.subr.mxu0 0.0
    %1580 = vmatpush1.msra.mxu0 0.0
    %1581 = vmatprep.subr.mxu0 0.0
    %1582 = vmatpush1.msra.mxu0 0.0
    %1583 = vmatprep.subr.mxu0 0.0
    %1584 = vmatpush1.msra.mxu0 0.0
    %1585 = vmatprep.subr.mxu0 0.0
    %1586 = vmatpush1.msra.mxu0 0.0
    %1587 = vmatprep.mubr.f32.mxu0 0.0
    %1588 = vmatmul.mubr.f32.gmra.mrb[0].mxu0 %v1518
    %v1589 = vpop.f32.mrb[0].mxu0
    %v1590 = vadd.f32 0.0, %v1589
    %v1591 = vpop.f32.mrb[0].mxu0
    %1592 = vmatprep.mubr.f32.mxu0 0.0
    %1593 = vmatmul.mubr.f32.gmra.mrb[0].mxu0 %v1521
    %v1594 = vpop.f32.mrb[0].mxu0
    %v1595 = vadd.f32 0.0, %v1594
    %v1596 = vpop.f32.mrb[0].mxu0
    %1597 = vdwg.mxu0
    %v1599 = vsel %vm1347, %v1429, 0
    %v1602 = vsel %vm1347, %v1431, 0
    %1604 = vmatprep.subr.mxu0 0.0
    %1605 = vmatpush1.msra.mxu0 %v913
    %1606 = vmatprep.subr.mxu0 0.0
    %1607 = vmatpush1.msra.mxu0 %v918
    %1608 = vmatprep.subr.mxu0 0.0
    %1609 = vmatpush1.msra.mxu0 0.0
    %1610 = vmatprep.subr.mxu0 0.0
    %1611 = vmatpush1.msra.mxu0 0.0
    %1612 = vmatprep.subr.mxu0 0.0
    %1613 = vmatpush1.msra.mxu0 0.0
    %1614 = vmatprep.subr.mxu0 0.0
    %1615 = vmatpush1.msra.mxu0 0.0
    %1616 = vmatprep.subr.mxu0 0.0
    %1617 = vmatpush1.msra.mxu0 0.0
    %1618 = vmatprep.subr.mxu0 0.0
    %1619 = vmatpush1.msra.mxu0 0.0
    %1620 = vmatprep.subr.mxu0 0.0
    %1621 = vmatpush1.msra.mxu0 0.0
    %1622 = vmatprep.subr.mxu0 0.0
    %1623 = vmatpush1.msra.mxu0 0.0
    %1624 = vmatprep.subr.mxu0 0.0
    %1625 = vmatpush1.msra.mxu0 0.0
    %1626 = vmatprep.subr.mxu0 0.0
    %1627 = vmatpush1.msra.mxu0 0.0
    %1628 = vmatprep.subr.mxu0 0.0
    %1629 = vmatpush1.msra.mxu0 0.0
    %1630 = vmatprep.subr.mxu0 0.0
    %1631 = vmatpush1.msra.mxu0 0.0
    %1632 = vmatprep.subr.mxu0 0.0
    %1633 = vmatpush1.msra.mxu0 0.0
    %1634 = vmatprep.subr.mxu0 0.0
    %1635 = vmatpush1.msra.mxu0 0.0
    %1636 = vmatprep.subr.mxu0 0.0
    %1637 = vmatpush1.msra.mxu0 0.0
    %1638 = vmatprep.subr.mxu0 0.0
    %1639 = vmatpush1.msra.mxu0 0.0
    %1640 = vmatprep.subr.mxu0 0.0
    %1641 = vmatpush1.msra.mxu0 0.0
    %1642 = vmatprep.subr.mxu0 0.0
    %1643 = vmatpush1.msra.mxu0 0.0
    %1644 = vmatprep.subr.mxu0 0.0
    %1645 = vmatpush1.msra.mxu0 0.0
    %1646 = vmatprep.subr.mxu0 0.0
    %1647 = vmatpush1.msra.mxu0 0.0
    %1648 = vmatprep.subr.mxu0 0.0
    %1649 = vmatpush1.msra.mxu0 0.0
    %1650 = vmatprep.subr.mxu0 0.0
    %1651 = vmatpush1.msra.mxu0 0.0
    %1652 = vmatprep.subr.mxu0 0.0
    %1653 = vmatpush1.msra.mxu0 0.0
    %1654 = vmatprep.subr.mxu0 0.0
    %1655 = vmatpush1.msra.mxu0 0.0
    %1656 = vmatprep.subr.mxu0 0.0
    %1657 = vmatpush1.msra.mxu0 0.0
    %1658 = vmatprep.subr.mxu0 0.0
    %1659 = vmatpush1.msra.mxu0 0.0
    %1660 = vmatprep.subr.mxu0 0.0
    %1661 = vmatpush1.msra.mxu0 0.0
    %1662 = vmatprep.subr.mxu0 0.0
    %1663 = vmatpush1.msra.mxu0 0.0
    %1664 = vmatprep.subr.mxu0 0.0
    %1665 = vmatpush1.msra.mxu0 0.0
    %1666 = vmatprep.subr.mxu0 0.0
    %1667 = vmatpush1.msra.mxu0 0.0
    %1668 = vmatprep.mubr.f32.mxu0 0.0
    %1669 = vmatmul.mubr.f32.gmra.mrb[0].mxu0 %v1599
    %v1670 = vpop.f32.mrb[0].mxu0
    %v1671 = vadd.f32 0.0, %v1670
    %v1672 = vpop.f32.mrb[0].mxu0
    %1673 = vmatprep.mubr.f32.mxu0 0.0
    %1674 = vmatmul.mubr.f32.gmra.mrb[0].mxu0 %v1602
    %v1675 = vpop.f32.mrb[0].mxu0
    %v1676 = vadd.f32 0.0, %v1675
    %v1677 = vpop.f32.mrb[0].mxu0
    %1678 = vdwg.mxu0
    %v1680 = vsel %vm1347, %v1433, 0
    %v1683 = vsel %vm1347, %v1435, 0
    %1685 = vmatprep.subr.mxu0 0.0
    %1686 = vmatpush1.msra.mxu0 %v988
    %1687 = vmatprep.subr.mxu0 0.0
    %1688 = vmatpush1.msra.mxu0 %v993
    %1689 = vmatprep.subr.mxu0 0.0
    %1690 = vmatpush1.msra.mxu0 0.0
    %1691 = vmatprep.subr.mxu0 0.0
    %1692 = vmatpush1.msra.mxu0 0.0
    %1693 = vmatprep.subr.mxu0 0.0
    %1694 = vmatpush1.msra.mxu0 0.0
    %1695 = vmatprep.subr.mxu0 0.0
    %1696 = vmatpush1.msra.mxu0 0.0
    %1697 = vmatprep.subr.mxu0 0.0
    %1698 = vmatpush1.msra.mxu0 0.0
    %1699 = vmatprep.subr.mxu0 0.0
    %1700 = vmatpush1.msra.mxu0 0.0
    %1701 = vmatprep.subr.mxu0 0.0
    %1702 = vmatpush1.msra.mxu0 0.0
    %1703 = vmatprep.subr.mxu0 0.0
    %1704 = vmatpush1.msra.mxu0 0.0
    %1705 = vmatprep.subr.mxu0 0.0
    %1706 = vmatpush1.msra.mxu0 0.0
    %1707 = vmatprep.subr.mxu0 0.0
    %1708 = vmatpush1.msra.mxu0 0.0
    %1709 = vmatprep.subr.mxu0 0.0
    %1710 = vmatpush1.msra.mxu0 0.0
    %1711 = vmatprep.subr.mxu0 0.0
    %1712 = vmatpush1.msra.mxu0 0.0
    %1713 = vmatprep.subr.mxu0 0.0
    %1714 = vmatpush1.msra.mxu0 0.0
    %1715 = vmatprep.subr.mxu0 0.0
    %1716 = vmatpush1.msra.mxu0 0.0
    %1717 = vmatprep.subr.mxu0 0.0
    %1718 = vmatpush1.msra.mxu0 0.0
    %1719 = vmatprep.subr.mxu0 0.0
    %1720 = vmatpush1.msra.mxu0 0.0
    %1721 = vmatprep.subr.mxu0 0.0
    %1722 = vmatpush1.msra.mxu0 0.0
    %1723 = vmatprep.subr.mxu0 0.0
    %1724 = vmatpush1.msra.mxu0 0.0
    %1725 = vmatprep.subr.mxu0 0.0
    %1726 = vmatpush1.msra.mxu0 0.0
    %1727 = vmatprep.subr.mxu0 0.0
    %1728 = vmatpush1.msra.mxu0 0.0
    %1729 = vmatprep.subr.mxu0 0.0
    %1730 = vmatpush1.msra.mxu0 0.0
    %1731 = vmatprep.subr.mxu0 0.0
    %1732 = vmatpush1.msra.mxu0 0.0
    %1733 = vmatprep.subr.mxu0 0.0
    %1734 = vmatpush1.msra.mxu0 0.0
    %1735 = vmatprep.subr.mxu0 0.0
    %1736 = vmatpush1.msra.mxu0 0.0
    %1737 = vmatprep.subr.mxu0 0.0
    %1738 = vmatpush1.msra.mxu0 0.0
    %1739 = vmatprep.subr.mxu0 0.0
    %1740 = vmatpush1.msra.mxu0 0.0
    %1741 = vmatprep.subr.mxu0 0.0
    %1742 = vmatpush1.msra.mxu0 0.0
    %1743 = vmatprep.subr.mxu0 0.0
    %1744 = vmatpush1.msra.mxu0 0.0
    %1745 = vmatprep.subr.mxu0 0.0
    %1746 = vmatpush1.msra.mxu0 0.0
    %1747 = vmatprep.subr.mxu0 0.0
    %1748 = vmatpush1.msra.mxu0 0.0
    %1749 = vmatprep.mubr.f32.mxu0 0.0
    %1750 = vmatmul.mubr.f32.gmra.mrb[0].mxu0 %v1680
    %v1751 = vpop.f32.mrb[0].mxu0
    %v1752 = vadd.f32 0.0, %v1751
    %v1753 = vpop.f32.mrb[0].mxu0
    %1754 = vmatprep.mubr.f32.mxu0 0.0
    %1755 = vmatmul.mubr.f32.gmra.mrb[0].mxu0 %v1683
    %v1756 = vpop.f32.mrb[0].mxu0
    %v1757 = vadd.f32 0.0, %v1756
    %v1758 = vpop.f32.mrb[0].mxu0
    %1759 = vdwg.mxu0
    %v1760 = vld [vmem:[%s5] sm:$0xff]
    %v1761 = vld [vmem:[%s5 + $0x8] sm:$0xff]
    %v1762 = vld [vmem:[%s5 + $0x10] sm:$0xff]
    %v1763 = vld [vmem:[%s5 + $0x18] sm:$0xff]
    %v1765 = vsel %vm998, %v1509, 0
    %v1768 = vsel %vm998, %v1514, 0
    %1770 = vmatprep.subr.mxu0 0.0
    %1771 = vmatpush1.msra.mxu0 %v1760
    %1772 = vmatprep.subr.mxu0 0.0
    %1773 = vmatpush1.msra.mxu0 0.0
    %1774 = vmatprep.subr.mxu0 0.0
    %1775 = vmatpush1.msra.mxu0 0.0
    %1776 = vmatprep.subr.mxu0 0.0
    %1777 = vmatpush1.msra.mxu0 0.0
    %1778 = vmatprep.subr.mxu0 0.0
    %1779 = vmatpush1.msra.mxu0 0.0
    %1780 = vmatprep.subr.mxu0 0.0
    %1781 = vmatpush1.msra.mxu0 0.0
    %1782 = vmatprep.subr.mxu0 0.0
    %1783 = vmatpush1.msra.mxu0 0.0
    %1784 = vmatprep.subr.mxu0 0.0
    %1785 = vmatpush1.msra.mxu0 0.0
    %1786 = vmatprep.subr.mxu0 0.0
    %1787 = vmatpush1.msra.mxu0 0.0
    %1788 = vmatprep.subr.mxu0 0.0
    %1789 = vmatpush1.msra.mxu0 0.0
    %1790 = vmatprep.subr.mxu0 0.0
    %1791 = vmatpush1.msra.mxu0 0.0
    %1792 = vmatprep.subr.mxu0 0.0
    %1793 = vmatpush1.msra.mxu0 0.0
    %1794 = vmatprep.subr.mxu0 0.0
    %1795 = vmatpush1.msra.mxu0 0.0
    %1796 = vmatprep.subr.mxu0 0.0
    %1797 = vmatpush1.msra.mxu0 0.0
    %1798 = vmatprep.subr.mxu0 0.0
    %1799 = vmatpush1.msra.mxu0 0.0
    %1800 = vmatprep.subr.mxu0 0.0
    %1801 = vmatpush1.msra.mxu0 0.0
    %1802 = vmatprep.subr.mxu0 0.0
    %1803 = vmatpush1.msra.mxu0 0.0
    %1804 = vmatprep.subr.mxu0 0.0
    %1805 = vmatpush1.msra.mxu0 0.0
    %1806 = vmatprep.subr.mxu0 0.0
    %1807 = vmatpush1.msra.mxu0 0.0
    %1808 = vmatprep.subr.mxu0 0.0
    %1809 = vmatpush1.msra.mxu0 0.0
    %1810 = vmatprep.subr.mxu0 0.0
    %1811 = vmatpush1.msra.mxu0 0.0
    %1812 = vmatprep.subr.mxu0 0.0
    %1813 = vmatpush1.msra.mxu0 0.0
    %1814 = vmatprep.subr.mxu0 0.0
    %1815 = vmatpush1.msra.mxu0 0.0
    %1816 = vmatprep.subr.mxu0 0.0
    %1817 = vmatpush1.msra.mxu0 0.0
    %1818 = vmatprep.subr.mxu0 0.0
    %1819 = vmatpush1.msra.mxu0 0.0
    %1820 = vmatprep.subr.mxu0 0.0
    %1821 = vmatpush1.msra.mxu0 0.0
    %1822 = vmatprep.subr.mxu0 0.0
    %1823 = vmatpush1.msra.mxu0 0.0
    %1824 = vmatprep.subr.mxu0 0.0
    %1825 = vmatpush1.msra.mxu0 0.0
    %1826 = vmatprep.subr.mxu0 0.0
    %1827 = vmatpush1.msra.mxu0 0.0
    %1828 = vmatprep.subr.mxu0 0.0
    %1829 = vmatpush1.msra.mxu0 0.0
    %1830 = vmatprep.subr.mxu0 0.0
    %1831 = vmatpush1.msra.mxu0 0.0
    %1832 = vmatprep.subr.mxu0 0.0
    %1833 = vmatpush1.msra.mxu0 0.0
    %1834 = vmatprep.mubr.f32.mxu0 0.0
    %1835 = vmatmul.mubr.f32.gmra.mrb[0].mxu0 %v1765
    %v1836 = vpop.f32.mrb[0].mxu0
    %v1837 = vadd.f32 0.0, %v1836
    %v1838 = vpop.f32.mrb[0].mxu0
    %1839 = vmatprep.mubr.f32.mxu0 0.0
    %1840 = vmatmul.mubr.f32.gmra.mrb[0].mxu0 %v1768
    %v1841 = vpop.f32.mrb[0].mxu0
    %v1842 = vadd.f32 0.0, %v1841
    %v1843 = vpop.f32.mrb[0].mxu0
    %1844 = vdwg.mxu0
    %v1846 = vsel %vm998, %v1590, 0
    %v1849 = vsel %vm998, %v1595, 0
    %1851 = vmatprep.subr.mxu0 0.0
    %1852 = vmatpush1.msra.mxu0 %v1761
    %1853 = vmatprep.subr.mxu0 0.0
    %1854 = vmatpush1.msra.mxu0 0.0
    %1855 = vmatprep.subr.mxu0 0.0
    %1856 = vmatpush1.msra.mxu0 0.0
    %1857 = vmatprep.subr.mxu0 0.0
    %1858 = vmatpush1.msra.mxu0 0.0
    %1859 = vmatprep.subr.mxu0 0.0
    %1860 = vmatpush1.msra.mxu0 0.0
    %1861 = vmatprep.subr.mxu0 0.0
    %1862 = vmatpush1.msra.mxu0 0.0
    %1863 = vmatprep.subr.mxu0 0.0
    %1864 = vmatpush1.msra.mxu0 0.0
    %1865 = vmatprep.subr.mxu0 0.0
    %1866 = vmatpush1.msra.mxu0 0.0
    %1867 = vmatprep.subr.mxu0 0.0
    %1868 = vmatpush1.msra.mxu0 0.0
    %1869 = vmatprep.subr.mxu0 0.0
    %1870 = vmatpush1.msra.mxu0 0.0
    %1871 = vmatprep.subr.mxu0 0.0
    %1872 = vmatpush1.msra.mxu0 0.0
    %1873 = vmatprep.subr.mxu0 0.0
    %1874 = vmatpush1.msra.mxu0 0.0
    %1875 = vmatprep.subr.mxu0 0.0
    %1876 = vmatpush1.msra.mxu0 0.0
    %1877 = vmatprep.subr.mxu0 0.0
    %1878 = vmatpush1.msra.mxu0 0.0
    %1879 = vmatprep.subr.mxu0 0.0
    %1880 = vmatpush1.msra.mxu0 0.0
    %1881 = vmatprep.subr.mxu0 0.0
    %1882 = vmatpush1.msra.mxu0 0.0
    %1883 = vmatprep.subr.mxu0 0.0
    %1884 = vmatpush1.msra.mxu0 0.0
    %1885 = vmatprep.subr.mxu0 0.0
    %1886 = vmatpush1.msra.mxu0 0.0
    %1887 = vmatprep.subr.mxu0 0.0
    %1888 = vmatpush1.msra.mxu0 0.0
    %1889 = vmatprep.subr.mxu0 0.0
    %1890 = vmatpush1.msra.mxu0 0.0
    %1891 = vmatprep.subr.mxu0 0.0
    %1892 = vmatpush1.msra.mxu0 0.0
    %1893 = vmatprep.subr.mxu0 0.0
    %1894 = vmatpush1.msra.mxu0 0.0
    %1895 = vmatprep.subr.mxu0 0.0
    %1896 = vmatpush1.msra.mxu0 0.0
    %1897 = vmatprep.subr.mxu0 0.0
    %1898 = vmatpush1.msra.mxu0 0.0
    %1899 = vmatprep.subr.mxu0 0.0
    %1900 = vmatpush1.msra.mxu0 0.0
    %1901 = vmatprep.subr.mxu0 0.0
    %1902 = vmatpush1.msra.mxu0 0.0
    %1903 = vmatprep.subr.mxu0 0.0
    %1904 = vmatpush1.msra.mxu0 0.0
    %1905 = vmatprep.subr.mxu0 0.0
    %1906 = vmatpush1.msra.mxu0 0.0
    %1907 = vmatprep.subr.mxu0 0.0
    %1908 = vmatpush1.msra.mxu0 0.0
    %1909 = vmatprep.subr.mxu0 0.0
    %1910 = vmatpush1.msra.mxu0 0.0
    %1911 = vmatprep.subr.mxu0 0.0
    %1912 = vmatpush1.msra.mxu0 0.0
    %1913 = vmatprep.subr.mxu0 0.0
    %1914 = vmatpush1.msra.mxu0 0.0
    %1915 = vmatprep.mubr.f32.mxu0 0.0
    %1916 = vmatmul.mubr.f32.gmra.mrb[0].mxu0 %v1846
    %v1917 = vpop.f32.mrb[0].mxu0
    %v1918 = vadd.f32 0.0, %v1917
    %v1919 = vpop.f32.mrb[0].mxu0
    %1920 = vmatprep.mubr.f32.mxu0 0.0
    %1921 = vmatmul.mubr.f32.gmra.mrb[0].mxu0 %v1849
    %v1922 = vpop.f32.mrb[0].mxu0
    %v1923 = vadd.f32 0.0, %v1922
    %v1924 = vpop.f32.mrb[0].mxu0
    %1925 = vdwg.mxu0
    %v1927 = vsel %vm998, %v1671, 0
    %v1930 = vsel %vm998, %v1676, 0
    %1932 = vmatprep.subr.mxu0 0.0
    %1933 = vmatpush1.msra.mxu0 %v1762
    %1934 = vmatprep.subr.mxu0 0.0
    %1935 = vmatpush1.msra.mxu0 0.0
    %1936 = vmatprep.subr.mxu0 0.0
    %1937 = vmatpush1.msra.mxu0 0.0
    %1938 = vmatprep.subr.mxu0 0.0
    %1939 = vmatpush1.msra.mxu0 0.0
    %1940 = vmatprep.subr.mxu0 0.0
    %1941 = vmatpush1.msra.mxu0 0.0
    %1942 = vmatprep.subr.mxu0 0.0
    %1943 = vmatpush1.msra.mxu0 0.0
    %1944 = vmatprep.subr.mxu0 0.0
    %1945 = vmatpush1.msra.mxu0 0.0
    %1946 = vmatprep.subr.mxu0 0.0
    %1947 = vmatpush1.msra.mxu0 0.0
    %1948 = vmatprep.subr.mxu0 0.0
    %1949 = vmatpush1.msra.mxu0 0.0
    %1950 = vmatprep.subr.mxu0 0.0
    %1951 = vmatpush1.msra.mxu0 0.0
    %1952 = vmatprep.subr.mxu0 0.0
    %1953 = vmatpush1.msra.mxu0 0.0
    %1954 = vmatprep.subr.mxu0 0.0
    %1955 = vmatpush1.msra.mxu0 0.0
    %1956 = vmatprep.subr.mxu0 0.0
    %1957 = vmatpush1.msra.mxu0 0.0
    %1958 = vmatprep.subr.mxu0 0.0
    %1959 = vmatpush1.msra.mxu0 0.0
    %1960 = vmatprep.subr.mxu0 0.0
    %1961 = vmatpush1.msra.mxu0 0.0
    %1962 = vmatprep.subr.mxu0 0.0
    %1963 = vmatpush1.msra.mxu0 0.0
    %1964 = vmatprep.subr.mxu0 0.0
    %1965 = vmatpush1.msra.mxu0 0.0
    %1966 = vmatprep.subr.mxu0 0.0
    %1967 = vmatpush1.msra.mxu0 0.0
    %1968 = vmatprep.subr.mxu0 0.0
    %1969 = vmatpush1.msra.mxu0 0.0
    %1970 = vmatprep.subr.mxu0 0.0
    %1971 = vmatpush1.msra.mxu0 0.0
    %1972 = vmatprep.subr.mxu0 0.0
    %1973 = vmatpush1.msra.mxu0 0.0
    %1974 = vmatprep.subr.mxu0 0.0
    %1975 = vmatpush1.msra.mxu0 0.0
    %1976 = vmatprep.subr.mxu0 0.0
    %1977 = vmatpush1.msra.mxu0 0.0
    %1978 = vmatprep.subr.mxu0 0.0
    %1979 = vmatpush1.msra.mxu0 0.0
    %1980 = vmatprep.subr.mxu0 0.0
    %1981 = vmatpush1.msra.mxu0 0.0
    %1982 = vmatprep.subr.mxu0 0.0
    %1983 = vmatpush1.msra.mxu0 0.0
    %1984 = vmatprep.subr.mxu0 0.0
    %1985 = vmatpush1.msra.mxu0 0.0
    %1986 = vmatprep.subr.mxu0 0.0
    %1987 = vmatpush1.msra.mxu0 0.0
    %1988 = vmatprep.subr.mxu0 0.0
    %1989 = vmatpush1.msra.mxu0 0.0
    %1990 = vmatprep.subr.mxu0 0.0
    %1991 = vmatpush1.msra.mxu0 0.0
    %1992 = vmatprep.subr.mxu0 0.0
    %1993 = vmatpush1.msra.mxu0 0.0
    %1994 = vmatprep.subr.mxu0 0.0
    %1995 = vmatpush1.msra.mxu0 0.0
    %1996 = vmatprep.mubr.f32.mxu0 0.0
    %1997 = vmatmul.mubr.f32.gmra.mrb[0].mxu0 %v1927
    %v1998 = vpop.f32.mrb[0].mxu0
    %v1999 = vadd.f32 0.0, %v1998
    %v2000 = vpop.f32.mrb[0].mxu0
    %2001 = vmatprep.mubr.f32.mxu0 0.0
    %2002 = vmatmul.mubr.f32.gmra.mrb[0].mxu0 %v1930
    %v2003 = vpop.f32.mrb[0].mxu0
    %v2004 = vadd.f32 0.0, %v2003
    %v2005 = vpop.f32.mrb[0].mxu0
    %2006 = vdwg.mxu0
    %v2008 = vsel %vm998, %v1752, 0
    %v2011 = vsel %vm998, %v1757, 0
    %2013 = vmatprep.subr.mxu0 0.0
    %2014 = vmatpush1.msra.mxu0 %v1763
    %2015 = vmatprep.subr.mxu0 0.0
    %2016 = vmatpush1.msra.mxu0 0.0
    %2017 = vmatprep.subr.mxu0 0.0
    %2018 = vmatpush1.msra.mxu0 0.0
    %2019 = vmatprep.subr.mxu0 0.0
    %2020 = vmatpush1.msra.mxu0 0.0
    %2021 = vmatprep.subr.mxu0 0.0
    %2022 = vmatpush1.msra.mxu0 0.0
    %2023 = vmatprep.subr.mxu0 0.0
    %2024 = vmatpush1.msra.mxu0 0.0
    %2025 = vmatprep.subr.mxu0 0.0
    %2026 = vmatpush1.msra.mxu0 0.0
    %2027 = vmatprep.subr.mxu0 0.0
    %2028 = vmatpush1.msra.mxu0 0.0
    %2029 = vmatprep.subr.mxu0 0.0
    %2030 = vmatpush1.msra.mxu0 0.0
    %2031 = vmatprep.subr.mxu0 0.0
    %2032 = vmatpush1.msra.mxu0 0.0
    %2033 = vmatprep.subr.mxu0 0.0
    %2034 = vmatpush1.msra.mxu0 0.0
    %2035 = vmatprep.subr.mxu0 0.0
    %2036 = vmatpush1.msra.mxu0 0.0
    %2037 = vmatprep.subr.mxu0 0.0
    %2038 = vmatpush1.msra.mxu0 0.0
    %2039 = vmatprep.subr.mxu0 0.0
    %2040 = vmatpush1.msra.mxu0 0.0
    %2041 = vmatprep.subr.mxu0 0.0
    %2042 = vmatpush1.msra.mxu0 0.0
    %2043 = vmatprep.subr.mxu0 0.0
    %2044 = vmatpush1.msra.mxu0 0.0
    %2045 = vmatprep.subr.mxu0 0.0
    %2046 = vmatpush1.msra.mxu0 0.0
    %2047 = vmatprep.subr.mxu0 0.0
    %2048 = vmatpush1.msra.mxu0 0.0
    %2049 = vmatprep.subr.mxu0 0.0
    %2050 = vmatpush1.msra.mxu0 0.0
    %2051 = vmatprep.subr.mxu0 0.0
    %2052 = vmatpush1.msra.mxu0 0.0
    %2053 = vmatprep.subr.mxu0 0.0
    %2054 = vmatpush1.msra.mxu0 0.0
    %2055 = vmatprep.subr.mxu0 0.0
    %2056 = vmatpush1.msra.mxu0 0.0
    %2057 = vmatprep.subr.mxu0 0.0
    %2058 = vmatpush1.msra.mxu0 0.0
    %2059 = vmatprep.subr.mxu0 0.0
    %2060 = vmatpush1.msra.mxu0 0.0
    %2061 = vmatprep.subr.mxu0 0.0
    %2062 = vmatpush1.msra.mxu0 0.0
    %2063 = vmatprep.subr.mxu0 0.0
    %2064 = vmatpush1.msra.mxu0 0.0
    %2065 = vmatprep.subr.mxu0 0.0
    %2066 = vmatpush1.msra.mxu0 0.0
    %2067 = vmatprep.subr.mxu0 0.0
    %2068 = vmatpush1.msra.mxu0 0.0
    %2069 = vmatprep.subr.mxu0 0.0
    %2070 = vmatpush1.msra.mxu0 0.0
    %2071 = vmatprep.subr.mxu0 0.0
    %2072 = vmatpush1.msra.mxu0 0.0
    %2073 = vmatprep.subr.mxu0 0.0
    %2074 = vmatpush1.msra.mxu0 0.0
    %2075 = vmatprep.subr.mxu0 0.0
    %2076 = vmatpush1.msra.mxu0 0.0
    %2077 = vmatprep.mubr.f32.mxu0 0.0
    %2078 = vmatmul.mubr.f32.gmra.mrb[0].mxu0 %v2008
    %v2079 = vpop.f32.mrb[0].mxu0
    %v2080 = vadd.f32 0.0, %v2079
    %v2081 = vpop.f32.mrb[0].mxu0
    %2082 = vmatprep.mubr.f32.mxu0 0.0
    %2083 = vmatmul.mubr.f32.gmra.mrb[0].mxu0 %v2011
    %v2084 = vpop.f32.mrb[0].mxu0
    %v2085 = vadd.f32 0.0, %v2084
    %v2086 = vpop.f32.mrb[0].mxu0
    %2087 = vdwg.mxu0
    %v2088 = vsel %vm57, %v1837, 0.0
    %v2089 = vsel %vm57, %v1918, 0.0
    %v2090 = vadd.f32 %v2088, %v2089
    %v2091 = vsel %vm57, %v1999, 0.0
    %v2092 = vadd.f32 %v2090, %v2091
    %v2093 = vsel %vm57, %v2080, 0.0
    %v2094 = vadd.f32 %v2092, %v2093
    %v2095 = vsel %vm57, %v1842, 0.0
    %v2096 = vsel %vm57, %v1923, 0.0
    %v2097 = vadd.f32 %v2095, %v2096
    %v2098 = vsel %vm57, %v2004, 0.0
    %v2099 = vadd.f32 %v2097, %v2098
    %v2100 = vsel %vm57, %v2085, 0.0
    %v2101 = vadd.f32 %v2099, %v2100
    %v2102 = vld [vmem:[%s6] sm:$0x1]
    %v2104 = vlaneseq
    %v2105 = vshrl.u32 %v2104, 7
    %v2106 = vsub.s32 0, %v2105
    %v2107 = vrot.slane %v2102, %v2106
    %v2109 = vadd.f32 %v2094, %v2107
    %v2110 = vadd.f32 %v2101, %v2107
    %v2111 = vadd.f32 %v39, %v2109
    %v2112 = vadd.f32 %v40, %v2110
    %v2113 = vld [vmem:[%s7] sm:$0xff]
    %v2114 = vld [vmem:[%s7 + $0x8] sm:$0xff]
    %v2115 = vld [vmem:[%s7 + $0x10] sm:$0xff]
    %v2116 = vld [vmem:[%s7 + $0x18] sm:$0xff]
    %v2117 = vld [vmem:[%s8] sm:$0x1]
    %v2119 = vlaneseq
    %v2120 = vshrl.u32 %v2119, 7
    %v2121 = vsub.s32 0, %v2120
    %v2122 = vrot.slane %v2117, %v2121
    %v2125 = vsel %vm57, %v2111, 0
    %v2128 = vsel %vm57, %v2112, 0
    %2130 = vmatprep.subr.mxu0 0.0
    %2131 = vmatpush1.msra.mxu0 %v2113
    %2132 = vmatprep.subr.mxu0 0.0
    %2133 = vmatpush1.msra.mxu0 %v2114
    %2134 = vmatprep.subr.mxu0 0.0
    %2135 = vmatpush1.msra.mxu0 %v2115
    %2136 = vmatprep.subr.mxu0 0.0
    %2137 = vmatpush1.msra.mxu0 %v2116
    %2138 = vmatprep.subr.mxu0 0.0
    %2139 = vmatpush1.msra.mxu0 0.0
    %2140 = vmatprep.subr.mxu0 0.0
    %2141 = vmatpush1.msra.mxu0 0.0
    %2142 = vmatprep.subr.mxu0 0.0
    %2143 = vmatpush1.msra.mxu0 0.0
    %2144 = vmatprep.subr.mxu0 0.0
    %2145 = vmatpush1.msra.mxu0 0.0
    %2146 = vmatprep.subr.mxu0 0.0
    %2147 = vmatpush1.msra.mxu0 0.0
    %2148 = vmatprep.subr.mxu0 0.0
    %2149 = vmatpush1.msra.mxu0 0.0
    %2150 = vmatprep.subr.mxu0 0.0
    %2151 = vmatpush1.msra.mxu0 0.0
    %2152 = vmatprep.subr.mxu0 0.0
    %2153 = vmatpush1.msra.mxu0 0.0
    %2154 = vmatprep.subr.mxu0 0.0
    %2155 = vmatpush1.msra.mxu0 0.0
    %2156 = vmatprep.subr.mxu0 0.0
    %2157 = vmatpush1.msra.mxu0 0.0
    %2158 = vmatprep.subr.mxu0 0.0
    %2159 = vmatpush1.msra.mxu0 0.0
    %2160 = vmatprep.subr.mxu0 0.0
    %2161 = vmatpush1.msra.mxu0 0.0
    %2162 = vmatprep.subr.mxu0 0.0
    %2163 = vmatpush1.msra.mxu0 0.0
    %2164 = vmatprep.subr.mxu0 0.0
    %2165 = vmatpush1.msra.mxu0 0.0
    %2166 = vmatprep.subr.mxu0 0.0
    %2167 = vmatpush1.msra.mxu0 0.0
    %2168 = vmatprep.subr.mxu0 0.0
    %2169 = vmatpush1.msra.mxu0 0.0
    %2170 = vmatprep.subr.mxu0 0.0
    %2171 = vmatpush1.msra.mxu0 0.0
    %2172 = vmatprep.subr.mxu0 0.0
    %2173 = vmatpush1.msra.mxu0 0.0
    %2174 = vmatprep.subr.mxu0 0.0
    %2175 = vmatpush1.msra.mxu0 0.0
    %2176 = vmatprep.subr.mxu0 0.0
    %2177 = vmatpush1.msra.mxu0 0.0
    %2178 = vmatprep.subr.mxu0 0.0
    %2179 = vmatpush1.msra.mxu0 0.0
    %2180 = vmatprep.subr.mxu0 0.0
    %2181 = vmatpush1.msra.mxu0 0.0
    %2182 = vmatprep.subr.mxu0 0.0
    %2183 = vmatpush1.msra.mxu0 0.0
    %2184 = vmatprep.subr.mxu0 0.0
    %2185 = vmatpush1.msra.mxu0 0.0
    %2186 = vmatprep.subr.mxu0 0.0
    %2187 = vmatpush1.msra.mxu0 0.0
    %2188 = vmatprep.subr.mxu0 0.0
    %2189 = vmatpush1.msra.mxu0 0.0
    %2190 = vmatprep.subr.mxu0 0.0
    %2191 = vmatpush1.msra.mxu0 0.0
    %2192 = vmatprep.subr.mxu0 0.0
    %2193 = vmatpush1.msra.mxu0 0.0
    %2194 = vmatprep.mubr.f32.mxu0 0.0
    %2195 = vmatmul.mubr.f32.gmra.mrb[0].mxu0 %v2125
    %v2196 = vpop.f32.mrb[0].mxu0
    %v2197 = vadd.f32 %v2122, %v2196
    %v2198 = vpop.f32.mrb[0].mxu0
    %2199 = vmatprep.mubr.f32.mxu0 0.0
    %2200 = vmatmul.mubr.f32.gmra.mrb[0].mxu0 %v2128
    %v2201 = vpop.f32.mrb[0].mxu0
    %v2202 = vadd.f32 %v2122, %v2201
    %v2203 = vpop.f32.mrb[0].mxu0
    %2204 = vdwg.mxu0
    %v2205 = vmax.f32 %v2197, 0.0
    %v2206 = vmax.f32 %v2202, 0.0
    %v2207 = vld [vmem:[%s9] sm:$0xff]
    %v2208 = vld [vmem:[%s9 + $0x8] sm:$0xff]
    %v2209 = vld [vmem:[%s9 + $0x10] sm:$0xff]
    %v2210 = vld [vmem:[%s9 + $0x18] sm:$0xff]
    %v2211 = vld [vmem:[%s9 + $0x20] sm:$0xff]
    %v2212 = vld [vmem:[%s9 + $0x28] sm:$0xff]
    %v2213 = vld [vmem:[%s9 + $0x30] sm:$0xff]
    %v2214 = vld [vmem:[%s9 + $0x38] sm:$0xff]
    %v2215 = vld [vmem:[%s9 + $0x40] sm:$0xff]
    %v2216 = vld [vmem:[%s9 + $0x48] sm:$0xff]
    %v2217 = vld [vmem:[%s9 + $0x50] sm:$0xff]
    %v2218 = vld [vmem:[%s9 + $0x58] sm:$0xff]
    %v2219 = vld [vmem:[%s9 + $0x60] sm:$0xff]
    %v2220 = vld [vmem:[%s9 + $0x68] sm:$0xff]
    %v2221 = vld [vmem:[%s9 + $0x70] sm:$0xff]
    %v2222 = vld [vmem:[%s9 + $0x78] sm:$0xff]
    %v2223 = vld [vmem:[%s10] sm:$0x1]
    %v2225 = vlaneseq
    %v2226 = vshrl.u32 %v2225, 7
    %v2227 = vsub.s32 0, %v2226
    %v2228 = vrot.slane %v2223, %v2227
    %2230 = vmatprep.subr.mxu0 0.0
    %2231 = vmatpush1.msra.mxu0 %v2207
    %2232 = vmatprep.subr.mxu0 0.0
    %2233 = vmatpush1.msra.mxu0 %v2208
    %2234 = vmatprep.subr.mxu0 0.0
    %2235 = vmatpush1.msra.mxu0 %v2209
    %2236 = vmatprep.subr.mxu0 0.0
    %2237 = vmatpush1.msra.mxu0 %v2210
    %2238 = vmatprep.subr.mxu0 0.0
    %2239 = vmatpush1.msra.mxu0 %v2211
    %2240 = vmatprep.subr.mxu0 0.0
    %2241 = vmatpush1.msra.mxu0 %v2212
    %2242 = vmatprep.subr.mxu0 0.0
    %2243 = vmatpush1.msra.mxu0 %v2213
    %2244 = vmatprep.subr.mxu0 0.0
    %2245 = vmatpush1.msra.mxu0 %v2214
    %2246 = vmatprep.subr.mxu0 0.0
    %2247 = vmatpush1.msra.mxu0 %v2215
    %2248 = vmatprep.subr.mxu0 0.0
    %2249 = vmatpush1.msra.mxu0 %v2216
    %2250 = vmatprep.subr.mxu0 0.0
    %2251 = vmatpush1.msra.mxu0 %v2217
    %2252 = vmatprep.subr.mxu0 0.0
    %2253 = vmatpush1.msra.mxu0 %v2218
    %2254 = vmatprep.subr.mxu0 0.0
    %2255 = vmatpush1.msra.mxu0 %v2219
    %2256 = vmatprep.subr.mxu0 0.0
    %2257 = vmatpush1.msra.mxu0 %v2220
    %2258 = vmatprep.subr.mxu0 0.0
    %2259 = vmatpush1.msra.mxu0 %v2221
    %2260 = vmatprep.subr.mxu0 0.0
    %2261 = vmatpush1.msra.mxu0 %v2222
    %2262 = vmatprep.subr.mxu0 0.0
    %2263 = vmatpush1.msra.mxu0 0.0
    %2264 = vmatprep.subr.mxu0 0.0
    %2265 = vmatpush1.msra.mxu0 0.0
    %2266 = vmatprep.subr.mxu0 0.0
    %2267 = vmatpush1.msra.mxu0 0.0
    %2268 = vmatprep.subr.mxu0 0.0
    %2269 = vmatpush1.msra.mxu0 0.0
    %2270 = vmatprep.subr.mxu0 0.0
    %2271 = vmatpush1.msra.mxu0 0.0
    %2272 = vmatprep.subr.mxu0 0.0
    %2273 = vmatpush1.msra.mxu0 0.0
    %2274 = vmatprep.subr.mxu0 0.0
    %2275 = vmatpush1.msra.mxu0 0.0
    %2276 = vmatprep.subr.mxu0 0.0
    %2277 = vmatpush1.msra.mxu0 0.0
    %2278 = vmatprep.subr.mxu0 0.0
    %2279 = vmatpush1.msra.mxu0 0.0
    %2280 = vmatprep.subr.mxu0 0.0
    %2281 = vmatpush1.msra.mxu0 0.0
    %2282 = vmatprep.subr.mxu0 0.0
    %2283 = vmatpush1.msra.mxu0 0.0
    %2284 = vmatprep.subr.mxu0 0.0
    %2285 = vmatpush1.msra.mxu0 0.0
    %2286 = vmatprep.subr.mxu0 0.0
    %2287 = vmatpush1.msra.mxu0 0.0
    %2288 = vmatprep.subr.mxu0 0.0
    %2289 = vmatpush1.msra.mxu0 0.0
    %2290 = vmatprep.subr.mxu0 0.0
    %2291 = vmatpush1.msra.mxu0 0.0
    %2292 = vmatprep.subr.mxu0 0.0
    %2293 = vmatpush1.msra.mxu0 0.0
    %2294 = vmatprep.mubr.f32.mxu0 0.0
    %2295 = vmatmul.mubr.f32.gmra.mrb[0].mxu0 %v2205
    %v2296 = vpop.f32.mrb[0].mxu0
    %v2297 = vadd.f32 %v2228, %v2296
    %v2298 = vpop.f32.mrb[0].mxu0
    %2299 = vmatprep.mubr.f32.mxu0 0.0
    %2300 = vmatmul.mubr.f32.gmra.mrb[0].mxu0 %v2206
    %v2301 = vpop.f32.mrb[0].mxu0
    %v2302 = vadd.f32 %v2228, %v2301
    %v2303 = vpop.f32.mrb[0].mxu0
    %2304 = vdwg.mxu0
    %v2305 = vadd.f32 %v2111, %v2297
    %v2306 = vadd.f32 %v2112, %v2302
    %2307 = vst.msk [vmem:[#allocation2] sm:$0xff] %vm57, %v2305
    %2308 = vst.msk [vmem:[#allocation2 + $0x8] sm:$0xff] %vm57, %v2306
    // Predicated region
    $region46: #{_block_forward_impl.1} parent=1 // pred_check
      _
    $region47: #{_block_forward_impl.1} parent=1 // pred_check_branch
      %2310 = sbr.rel (0) target = $region49
    $region48: #{_block_forward_impl.1} parent=1 // pred_region
      %s2312 = ssub.s32 256, 256
      %2313 = vsyncadd [#allocation3], %s2312
      %s2314 = sshll.u32 [#allocation2], 4
      %s2315 = int_to_ptr.vmem [resolvable:$true] %s2314
      %2320 = dma.vmem_to_hbm [thread:$0]  %s2315, 256, %s11, [#allocation3], 128, 128, 8
    $region49: #{_block_forward_impl.1} parent=1 // pred_fallthru
      _
    // Predicated region
    $region50: #{_block_forward_impl.1} parent=1 // pred_check
      _
    $region51: #{_block_forward_impl.1} parent=1 // pred_check_branch
      %2322 = sbr.rel (0) target = $region53
    $region52: #{_block_forward_impl.1} parent=1 // pred_region
      %2323 = dma.done [#allocation3], 256
    $region53: #{_block_forward_impl.1} parent=1 // pred_fallthru
      _
    %2324 = vsyncpa [#allocation3], 1

</llo_original>
